<compile_context>
chip_gen: v6e
topology: v6e:2x2x1
jax: 0.10.0
libtpu: 0.0.40
codegen_flags: <defaults>
</compile_context>

<pallas_src>
import functools

import jax
import jax.numpy as jnp
from jax.experimental import pallas as pl
from jax.experimental.pallas import tpu as pltpu

_LANE = 128
_BN_EPS = 1e-5
_NEG_INF = -1e30


def _round_up(v, m):
    return (v + m - 1) // m * m


def _pad2(arr, rows, cols):
    pr = rows - arr.shape[0]
    pc = cols - arr.shape[1]
    if pr == 0 and pc == 0:
        return arr
    return jnp.pad(arr, ((0, pr), (0, pc)))


# ----------------------------------------------------------------------------
# Pallas kernels
# ----------------------------------------------------------------------------

def _sage_kernel(a_ref, xn_ref, xr_ref, wl_ref, wr_ref, b_ref, out_ref,
                 acc_ref, *, relu, logsoftmax, out_valid):
    """One row-tile of: out = (A@x) @ Wl + x @ Wr + b (+ fused ReLU / log_softmax).

    Grid = (row tiles, A-column reduction tiles). acc_ref accumulates the
    mean-aggregation A@x across the reduction axis; the dense epilogue (two
    MXU matmuls + bias + activation) runs on the last reduction step only.
    BatchNorm (eval) and the SAGE bias are pre-folded into wl/wr/b.
    """
    k = pl.program_id(1)

    @pl.when(k == 0)
    def _():
        acc_ref[...] = jnp.zeros_like(acc_ref)

    # bf16 x bf16 -> f32 accumulate on the MXU.
    acc_ref[...] += jnp.dot(a_ref[...], xn_ref[...],
                            preferred_element_type=jnp.float32)

    @pl.when(k == pl.num_programs(1) - 1)
    def _():
        agg = acc_ref[...].astype(xr_ref.dtype)                 # (tn, Cin_pad)
        h = jnp.dot(agg, wl_ref[...], preferred_element_type=jnp.float32)
        h += jnp.dot(xr_ref[...], wr_ref[...],
                     preferred_element_type=jnp.float32)
        h += b_ref[...]
        if relu:
            h = jnp.maximum(h, 0.0)
        if logsoftmax:
            # Mask padded channels before the (stable) log_softmax.
            col = jax.lax.broadcasted_iota(jnp.int32, h.shape, 1)
            h = jnp.where(col < out_valid, h, _NEG_INF)
            m = jnp.max(h, axis=-1, keepdims=True)
            s = h - m
            lse = jnp.log(jnp.sum(jnp.exp(s), axis=-1, keepdims=True))
            h = s - lse
        out_ref[...] = h.astype(out_ref.dtype)


def _linear_kernel(x_ref, w_ref, b_ref, out_ref, *, relu, logsoftmax, out_valid):
    h = jnp.dot(x_ref[...], w_ref[...],
                preferred_element_type=jnp.float32) + b_ref[...]
    if relu:
        h = jnp.maximum(h, 0.0)
    if logsoftmax:
        col = jax.lax.broadcasted_iota(jnp.int32, h.shape, 1)
        h = jnp.where(col < out_valid, h, _NEG_INF)
        m = jnp.max(h, axis=-1, keepdims=True)
        s = h - m
        lse = jnp.log(jnp.sum(jnp.exp(s), axis=-1, keepdims=True))
        h = s - lse
    out_ref[...] = h.astype(out_ref.dtype)


# ----------------------------------------------------------------------------
# pallas_call wrappers
# ----------------------------------------------------------------------------

def sage_layer(x_pad, a_pad, wl_pad, wr_pad, b_pad, *, relu, logsoftmax,
               out_valid, out_dtype, tn, tk):
    n_pad, cin_pad = x_pad.shape
    cout_pad = wl_pad.shape[1]
    grid = (n_pad // tn, n_pad // tk)

    flops = 2 * n_pad * n_pad * cin_pad + 2 * n_pad * (2 * cin_pad) * cout_pad
    transcendentals = n_pad * cout_pad if logsoftmax else 0
    bytes_accessed = (n_pad * n_pad * 2                        # A (bf16)
                      + 2 * n_pad * cin_pad * 2                # x (neighbor + root)
                      + 2 * cin_pad * cout_pad * 2             # Wl, Wr
                      + n_pad * cout_pad * jnp.dtype(out_dtype).itemsize)

    kernel = functools.partial(_sage_kernel, relu=relu, logsoftmax=logsoftmax,
                               out_valid=out_valid)
    return pl.pallas_call(
        kernel,
        out_shape=jax.ShapeDtypeStruct((n_pad, cout_pad), out_dtype),
        grid_spec=pltpu.PrefetchScalarGridSpec(
            num_scalar_prefetch=0,
            grid=grid,
            in_specs=[
                pl.BlockSpec((tn, tk), lambda i, k: (i, k)),             # A tile
                pl.BlockSpec((tk, cin_pad), lambda i, k: (k, 0)),        # neighbor feats
                pl.BlockSpec((tn, cin_pad), lambda i, k: (i, 0)),        # root feats
                pl.BlockSpec((cin_pad, cout_pad), lambda i, k: (0, 0)),  # Wl (folded)
                pl.BlockSpec((cin_pad, cout_pad), lambda i, k: (0, 0)),  # Wr (folded)
                pl.BlockSpec((1, cout_pad), lambda i, k: (0, 0)),        # folded bias
            ],
            out_specs=pl.BlockSpec((tn, cout_pad), lambda i, k: (i, 0)),
            scratch_shapes=[pltpu.VMEM((tn, cin_pad), jnp.float32)],
        ),
        compiler_params=pltpu.CompilerParams(
            dimension_semantics=("parallel", "arbitrary"),
            vmem_limit_bytes=32 * 1024 * 1024,
        ),
        cost_estimate=pl.CostEstimate(flops=flops,
                                      transcendentals=transcendentals,
                                      bytes_accessed=bytes_accessed),
    )(a_pad, x_pad, x_pad, wl_pad, wr_pad, b_pad)


def linear_layer(x_pad, w_pad, b_pad, *, relu, logsoftmax, out_valid,
                 out_dtype, tn):
    n_pad, kin_pad = x_pad.shape
    m_pad = w_pad.shape[1]

    flops = 2 * n_pad * kin_pad * m_pad
    transcendentals = n_pad * m_pad if logsoftmax else 0
    bytes_accessed = (n_pad * kin_pad * 2 + kin_pad * m_pad * 2
                      + n_pad * m_pad * jnp.dtype(out_dtype).itemsize)

    kernel = functools.partial(_linear_kernel, relu=relu, logsoftmax=logsoftmax,
                               out_valid=out_valid)
    return pl.pallas_call(
        kernel,
        out_shape=jax.ShapeDtypeStruct((n_pad, m_pad), out_dtype),
        grid_spec=pltpu.PrefetchScalarGridSpec(
            num_scalar_prefetch=0,
            grid=(n_pad // tn,),
            in_specs=[
                pl.BlockSpec((tn, kin_pad), lambda i: (i, 0)),
                pl.BlockSpec((kin_pad, m_pad), lambda i: (0, 0)),
                pl.BlockSpec((1, m_pad), lambda i: (0, 0)),
            ],
            out_specs=pl.BlockSpec((tn, m_pad), lambda i: (i, 0)),
        ),
        compiler_params=pltpu.CompilerParams(
            dimension_semantics=("parallel",),
            vmem_limit_bytes=32 * 1024 * 1024,
        ),
        cost_estimate=pl.CostEstimate(flops=flops,
                                      transcendentals=transcendentals,
                                      bytes_accessed=bytes_accessed),
    )(x_pad, w_pad, b_pad)


# ----------------------------------------------------------------------------
# Model (parameter setup + glue in plain JAX)
# ----------------------------------------------------------------------------

def init_cluster_gcn_params(key, in_channels, hidden_channels, out_channels,
                            num_layers, reduce_dims=None):
    params = {"convs": [], "bns": []}
    c_hidden = hidden_channels
    for i in range(num_layers):
        c_in = in_channels if i == 0 else c_hidden
        if i == num_layers - 1 and reduce_dims is None:
            c_hidden = out_channels
        key, k1, k2, k3 = jax.random.split(key, 4)
        scale = 1.0 / jnp.sqrt(jnp.float32(c_in))
        params["convs"].append({
            "wl": jax.random.normal(k1, (c_in, c_hidden), jnp.float32) * scale,
            "wr": jax.random.normal(k2, (c_in, c_hidden), jnp.float32) * scale,
            "bl": jax.random.normal(k3, (1, c_hidden), jnp.float32) * 0.01,
        })
        params["bns"].append({
            "gamma": jnp.ones((1, c_hidden), jnp.float32),
            "beta": jnp.zeros((1, c_hidden), jnp.float32),
            "rmean": jnp.zeros((1, c_hidden), jnp.float32),
            "rvar": jnp.ones((1, c_hidden), jnp.float32),
        })
    if reduce_dims is not None:
        key, k1, k2, k3, k4 = jax.random.split(key, 5)
        params["lin1"] = {
            "w": jax.random.normal(k1, (c_hidden, reduce_dims), jnp.float32)
                 / jnp.sqrt(jnp.float32(c_hidden)),
            "b": jax.random.normal(k2, (1, reduce_dims), jnp.float32) * 0.01,
        }
        params["lin2"] = {
            "w": jax.random.normal(k3, (reduce_dims, out_channels), jnp.float32)
                 / jnp.sqrt(jnp.float32(reduce_dims)),
            "b": jax.random.normal(k4, (1, out_channels), jnp.float32) * 0.01,
        }
    return params


def build_norm_adjacency(edge_index, num_nodes):
    """Dense row-normalized adjacency for mean aggregation over incoming edges."""
    src = edge_index[0]
    dst = edge_index[1]
    ones = jnp.ones(src.shape[0], jnp.float32)
    a = jnp.zeros((num_nodes, num_nodes), jnp.float32).at[dst, src].add(ones)
    deg = jnp.zeros((num_nodes,), jnp.float32).at[dst].add(ones)
    a = a / jnp.maximum(deg, 1.0)[:, None]
    return a


@functools.partial(jax.jit, static_argnames=("num_layers", "reduce_dims"))
def cluster_gcn_forward(params, x, edge_index, *, num_layers, reduce_dims=None):
    n, c_in = x.shape

    # Pad N to a multiple of 128 (lane-dense A tiles and lane-dense stores);
    # row tile capped at 256 so the A stripe + activations + double-buffering
    # stay far under v7x's 64 MiB VMEM.
    n128 = _round_up(n, _LANE)
    tn = min(256, n128)
    n_pad = _round_up(n128, tn)
    tk = tn

    cin_pad = _round_up(c_in, _LANE)
    x_pad = _pad2(x, n_pad, cin_pad).astype(jnp.bfloat16)

    # TODO(synk): dense adjacency is O(N^2); switch to CSR + scalar-prefetch
    # gather aggregation for large clusters (beyond a few thousand nodes).
    a = build_norm_adjacency(edge_index, n)
    a_pad = _pad2(a, n_pad, n_pad).astype(jnp.bfloat16)

    c_prev_pad = cin_pad
    last_c_out = c_in
    for i in range(num_layers):
        conv = params["convs"][i]
        wl, wr, bl = conv["wl"], conv["wr"], conv["bl"]
        c_out = wl.shape[1]
        c_out_pad = _round_up(c_out, _LANE)
        is_final_conv = (i == num_layers - 1) and (reduce_dims is None)
        apply_bn_relu = not is_final_conv

        if apply_bn_relu:
            # Fold eval-mode BatchNorm into the weights/bias (host-side).
            bn = params["bns"][i]
            s = bn["gamma"] * jax.lax.rsqrt(bn["rvar"] + _BN_EPS)   # (1, c_out)
            wl_f = wl * s
            wr_f = wr * s
            b_f = bl * s + bn["beta"] - bn["rmean"] * s
        else:
            wl_f, wr_f, b_f = wl, wr, bl

        wl_pad = _pad2(wl_f, c_prev_pad, c_out_pad).astype(jnp.bfloat16)
        wr_pad = _pad2(wr_f, c_prev_pad, c_out_pad).astype(jnp.bfloat16)
        b_pad = _pad2(b_f, 1, c_out_pad)                              # f32

        out_dtype = jnp.float32 if is_final_conv else jnp.bfloat16
        # TODO(synk): dropout is eval-mode identity (training-mode RNG dropout omitted).
        x_pad = sage_layer(x_pad, a_pad, wl_pad, wr_pad, b_pad,
                           relu=apply_bn_relu,
                           logsoftmax=is_final_conv,
                           out_valid=c_out,
                           out_dtype=out_dtype,
                           tn=tn, tk=tk)
        c_prev_pad = c_out_pad
        last_c_out = c_out

    if reduce_dims is not None:
        w1, b1 = params["lin1"]["w"], params["lin1"]["b"]
        rd = w1.shape[1]
        rd_pad = _round_up(rd, _LANE)
        x_pad = linear_layer(
            x_pad,
            _pad2(w1, c_prev_pad, rd_pad).astype(jnp.bfloat16),
            _pad2(b1, 1, rd_pad),
            relu=True, logsoftmax=False, out_valid=rd,
            out_dtype=jnp.bfloat16, tn=tn)
        w2, b2 = params["lin2"]["w"], params["lin2"]["b"]
        oc = w2.shape[1]
        oc_pad = _round_up(oc, _LANE)
        x_pad = linear_layer(
            x_pad,
            _pad2(w2, rd_pad, oc_pad).astype(jnp.bfloat16),
            _pad2(b2, 1, oc_pad),
            relu=False, logsoftmax=True, out_valid=oc,
            out_dtype=jnp.float32, tn=tn)
        last_c_out = oc

    return x_pad[:n, :last_c_out]


# ----------------------------------------------------------------------------
# Example run
# ----------------------------------------------------------------------------

if __name__ == "__main__":
    key = jax.random.PRNGKey(0)

    num_nodes = 64
    num_edges = 256
    in_channels = 16
    hidden_channels = 32
    out_channels = 8
    num_layers = 3
    reduce_dims = None  # forward path without the lin1/lin2 head

    key, kx, ksrc, kdst, kparams = jax.random.split(key, 5)
    x = jax.random.normal(kx, (num_nodes, in_channels), jnp.float32)
    src = jax.random.randint(ksrc, (num_edges,), 0, num_nodes, jnp.int32)
    dst = jax.random.randint(kdst, (num_edges,), 0, num_nodes, jnp.int32)
    edge_index = jnp.stack([src, dst], axis=0)  # (2, E)

    params = init_cluster_gcn_params(kparams, in_channels, hidden_channels,
                                     out_channels, num_layers, reduce_dims)

    out = cluster_gcn_forward(params, x, edge_index,
                              num_layers=num_layers, reduce_dims=reduce_dims)
    out = jax.block_until_ready(out)

    assert out.shape == (num_nodes, out_channels)
    assert bool(jnp.all(jnp.isfinite(out)))
    # log_softmax rows should sum to ~1 after exp
    assert bool(jnp.allclose(jnp.sum(jnp.exp(out), axis=-1), 1.0, atol=1e-4))

    print("KERNEL_OK")
</pallas_src>

<mosaic_0001>
module attributes {stable_mosaic.version = 11 : i64} {
  func.func private @main(%arg0: i32) attributes {dimension_semantics = [#tpu.dimension_semantics<core_parallel>], iteration_bounds = array<i64: 2>, tpu.core_type = #tpu.core_type<sc_scalar_subcore>, window_params = []} {
    return
  }
}

module attributes {stable_mosaic.version = 11 : i64} {
  func.func private @main(%arg0: i32) attributes {dimension_semantics = [#tpu.dimension_semantics<core_parallel>], iteration_bounds = array<i64: 2>, tpu.core_type = #tpu.core_type<sc_scalar_subcore>, window_params = []} {
    return
  }
}

module attributes {stable_mosaic.version = 11 : i64} {
  func.func @_sage_kernel(%arg0: i32, %arg1: i32, %arg2: memref<128x128xbf16, #tpu.memory_space<vmem>>, %arg3: memref<128x128xbf16, #tpu.memory_space<vmem>>, %arg4: memref<128x128xbf16, #tpu.memory_space<vmem>>, %arg5: memref<128x128xbf16, #tpu.memory_space<vmem>>, %arg6: memref<128x128xbf16, #tpu.memory_space<vmem>>, %arg7: memref<1x128xf32, #tpu.memory_space<vmem>>, %arg8: memref<128x128xf32, #tpu.memory_space<vmem>>, %arg9: memref<128x128xf32, #tpu.memory_space<vmem>>) attributes {dimension_semantics = [#tpu.dimension_semantics<parallel>, #tpu.dimension_semantics<arbitrary>], iteration_bounds = array<i64: 1, 1>, scalar_prefetch = 0 : i64, scratch_operands = 1 : i64, tpu.core_type = #tpu.core_type<tc>, window_params = [{transform_indices = @transform_0, window_bounds = array<i64: 128, 128>}, {transform_indices = @transform_1, window_bounds = array<i64: 128, 128>}, {transform_indices = @transform_2, window_bounds = array<i64: 128, 128>}, {pipeline_mode = #tpu.pipeline_mode<synchronous>, transform_indices = @transform_3, window_bounds = array<i64: 128, 128>}, {pipeline_mode = #tpu.pipeline_mode<synchronous>, transform_indices = @transform_4, window_bounds = array<i64: 128, 128>}, {pipeline_mode = #tpu.pipeline_mode<synchronous>, transform_indices = @transform_5, window_bounds = array<i64: 1, 128>}, {transform_indices = @transform_6, window_bounds = array<i64: 128, 128>}]} {
    %c0_i32 = arith.constant 0 : i32
    %0 = arith.cmpi eq, %arg1, %c0_i32 : i32
    %1 = arith.extui %0 : i1 to i32
    %c0_i32_0 = arith.constant 0 : i32
    %2 = arith.cmpi ne, %1, %c0_i32_0 : i32
    scf.if %2 {
      %cst_10 = arith.constant 0.000000e+00 : f32
      %12 = vector.broadcast %cst_10 : f32 to vector<128x128xf32>
      %c0_11 = arith.constant 0 : index
      %c0_12 = arith.constant 0 : index
      %13 = vector.load %arg9[%c0_11, %c0_12] : memref<128x128xf32, #tpu.memory_space<vmem>>, vector<128x128xf32>
      tpu.vector_store %arg9[%c0_11, %c0_12], %12 {strides = array<i32>} : memref<128x128xf32, #tpu.memory_space<vmem>>, vector<128x128xf32>,
    } else {
    }
    %c0 = arith.constant 0 : index
    %c0_1 = arith.constant 0 : index
    %3 = vector.load %arg9[%c0, %c0_1] : memref<128x128xf32, #tpu.memory_space<vmem>>, vector<128x128xf32>
    %c0_2 = arith.constant 0 : index
    %c0_3 = arith.constant 0 : index
    %4 = vector.load %arg2[%c0_2, %c0_3] : memref<128x128xbf16, #tpu.memory_space<vmem>>, vector<128x128xbf16>
    %c0_4 = arith.constant 0 : index
    %c0_5 = arith.constant 0 : index
    %5 = vector.load %arg3[%c0_4, %c0_5] : memref<128x128xbf16, #tpu.memory_space<vmem>>, vector<128x128xbf16>
    %cst = arith.constant dense<0.000000e+00> : vector<128x128xf32>
    %6 = tpu.matmul %4, %5, %cst {dimension_numbers = #tpu.dot_dimension_numbers<[1], [0], [0], [1], [0, 0, 1, 1], [], []>} : vector<128x128xbf16>, vector<128x128xbf16>, vector<128x128xf32> -> vector<128x128xf32>
    %7 = arith.addf %3, %6 : vector<128x128xf32>
    %c0_6 = arith.constant 0 : index
    %c0_7 = arith.constant 0 : index
    %8 = vector.load %arg9[%c0_6, %c0_7] : memref<128x128xf32, #tpu.memory_space<vmem>>, vector<128x128xf32>
    tpu.vector_store %arg9[%c0_6, %c0_7], %7 {strides = array<i32>} : memref<128x128xf32, #tpu.memory_space<vmem>>, vector<128x128xf32>,
    %c0_i32_8 = arith.constant 0 : i32
    %9 = arith.cmpi eq, %arg1, %c0_i32_8 : i32
    %10 = arith.extui %9 : i1 to i32
    %c0_i32_9 = arith.constant 0 : i32
    %11 = arith.cmpi ne, %10, %c0_i32_9 : i32
    scf.if %11 {
      %c0_10 = arith.constant 0 : index
      %c0_11 = arith.constant 0 : index
      %12 = vector.load %arg9[%c0_10, %c0_11] : memref<128x128xf32, #tpu.memory_space<vmem>>, vector<128x128xf32>
      %13 = arith.truncf %12 : vector<128x128xf32> to vector<128x128xbf16>
      %c0_12 = arith.constant 0 : index
      %c0_13 = arith.constant 0 : index
      %14 = vector.load %arg5[%c0_12, %c0_13] : memref<128x128xbf16, #tpu.memory_space<vmem>>, vector<128x128xbf16>
      %cst_14 = arith.constant dense<0.000000e+00> : vector<128x128xf32>
      %15 = tpu.matmul %13, %14, %cst_14 {dimension_numbers = #tpu.dot_dimension_numbers<[1], [0], [0], [1], [0, 0, 1, 1], [], []>} : vector<128x128xbf16>, vector<128x128xbf16>, vector<128x128xf32> -> vector<128x128xf32>
      %c0_15 = arith.constant 0 : index
      %c0_16 = arith.constant 0 : index
      %16 = vector.load %arg4[%c0_15, %c0_16] : memref<128x128xbf16, #tpu.memory_space<vmem>>, vector<128x128xbf16>
      %c0_17 = arith.constant 0 : index
      %c0_18 = arith.constant 0 : index
      %17 = vector.load %arg6[%c0_17, %c0_18] : memref<128x128xbf16, #tpu.memory_space<vmem>>, vector<128x128xbf16>
      %cst_19 = arith.constant dense<0.000000e+00> : vector<128x128xf32>
      %18 = tpu.matmul %16, %17, %cst_19 {dimension_numbers = #tpu.dot_dimension_numbers<[1], [0], [0], [1], [0, 0, 1, 1], [], []>} : vector<128x128xbf16>, vector<128x128xbf16>, vector<128x128xf32> -> vector<128x128xf32>
      %19 = arith.addf %15, %18 : vector<128x128xf32>
      %c0_20 = arith.constant 0 : index
      %c0_21 = arith.constant 0 : index
      %20 = vector.load %arg7[%c0_20, %c0_21] : memref<1x128xf32, #tpu.memory_space<vmem>>, vector<1x128xf32>
      %21 = vector.broadcast %20 : vector<1x128xf32> to vector<128x128xf32>
      %22 = arith.addf %19, %21 : vector<128x128xf32>
      %23 = tpu.iota {dimensions = array<i32: 1>} : vector<128x128xi32>
      %c8_i32 = arith.constant 8 : i32
      %24 = vector.broadcast %c8_i32 : i32 to vector<128x128xi32>
      %25 = arith.cmpi slt, %23, %24 : vector<128x128xi32>
      %cst_22 = arith.constant -1.000000e+30 : f32
      %26 = vector.broadcast %cst_22 : f32 to vector<128x128xf32>
      %27 = arith.select %25, %22, %26 : vector<128x128xi1>, vector<128x128xf32>
      %cst_23 = arith.constant dense<0xFF800000> : vector<128xf32>
      %28 = vector.multi_reduction <maximumf>, %27, %cst_23 [1] : vector<128x128xf32> to vector<128xf32>
      %29 = vector.shape_cast %28 : vector<128xf32> to vector<128x1xf32>
      %30 = vector.broadcast %29 : vector<128x1xf32> to vector<128x128xf32>
      %31 = arith.subf %27, %30 : vector<128x128xf32>
      %32 = math.exp %31 : vector<128x128xf32>
      %cst_24 = arith.constant dense<0.000000e+00> : vector<128xf32>
      %33 = vector.multi_reduction <add>, %32, %cst_24 [1] : vector<128x128xf32> to vector<128xf32>
      %34 = vector.shape_cast %33 : vector<128xf32> to vector<128x1xf32>
      %35 = math.log %34 : vector<128x1xf32>
      %36 = vector.broadcast %35 : vector<128x1xf32> to vector<128x128xf32>
      %37 = arith.subf %31, %36 : vector<128x128xf32>
      %c0_25 = arith.constant 0 : index
      %c0_26 = arith.constant 0 : index
      %38 = vector.load %arg8[%c0_25, %c0_26] : memref<128x128xf32, #tpu.memory_space<vmem>>, vector<128x128xf32>
      tpu.vector_store %arg8[%c0_25, %c0_26], %37 {strides = array<i32>} : memref<128x128xf32, #tpu.memory_space<vmem>>, vector<128x128xf32>,
    } else {
    }
    return
  }
  func.func @transform_0(%arg0: i32, %arg1: i32) -> (i32, i32) {
    %c0_i32 = arith.constant 0 : i32
    return %arg0, %arg1 : i32, i32
  }
  func.func @transform_1(%arg0: i32, %arg1: i32) -> (i32, i32) {
    %c0_i32 = arith.constant 0 : i32
    %c0_i32_0 = arith.constant 0 : i32
    return %arg1, %c0_i32 : i32, i32
  }
  func.func @transform_2(%arg0: i32, %arg1: i32) -> (i32, i32) {
    %c0_i32 = arith.constant 0 : i32
    %c0_i32_0 = arith.constant 0 : i32
    return %arg0, %c0_i32 : i32, i32
  }
  func.func @transform_3(%arg0: i32, %arg1: i32) -> (i32, i32) {
    %c0_i32 = arith.constant 0 : i32
    %c0_i32_0 = arith.constant 0 : i32
    %c0_i32_1 = arith.constant 0 : i32
    return %c0_i32, %c0_i32_0 : i32, i32
  }
  func.func @transform_4(%arg0: i32, %arg1: i32) -> (i32, i32) {
    %c0_i32 = arith.constant 0 : i32
    %c0_i32_0 = arith.constant 0 : i32
    %c0_i32_1 = arith.constant 0 : i32
    return %c0_i32, %c0_i32_0 : i32, i32
  }
  func.func @transform_5(%arg0: i32, %arg1: i32) -> (i32, i32) {
    %c0_i32 = arith.constant 0 : i32
    %c0_i32_0 = arith.constant 0 : i32
    %c0_i32_1 = arith.constant 0 : i32
    return %c0_i32, %c0_i32_0 : i32, i32
  }
  func.func @transform_6(%arg0: i32, %arg1: i32) -> (i32, i32) {
    %c0_i32 = arith.constant 0 : i32
    %c0_i32_0 = arith.constant 0 : i32
    return %arg0, %c0_i32 : i32, i32
  }
}

module attributes {stable_mosaic.version = 11 : i64} {
  func.func @_sage_kernel(%arg0: i32, %arg1: i32, %arg2: memref<128x128xbf16, #tpu.memory_space<vmem>>, %arg3: memref<128x128xbf16, #tpu.memory_space<vmem>>, %arg4: memref<128x128xbf16, #tpu.memory_space<vmem>>, %arg5: memref<128x128xbf16, #tpu.memory_space<vmem>>, %arg6: memref<128x128xbf16, #tpu.memory_space<vmem>>, %arg7: memref<1x128xf32, #tpu.memory_space<vmem>>, %arg8: memref<128x128xbf16, #tpu.memory_space<vmem>>, %arg9: memref<128x128xf32, #tpu.memory_space<vmem>>) attributes {dimension_semantics = [#tpu.dimension_semantics<parallel>, #tpu.dimension_semantics<arbitrary>], iteration_bounds = array<i64: 1, 1>, scalar_prefetch = 0 : i64, scratch_operands = 1 : i64, tpu.core_type = #tpu.core_type<tc>, window_params = [{transform_indices = @transform_0, window_bounds = array<i64: 128, 128>}, {transform_indices = @transform_1, window_bounds = array<i64: 128, 128>}, {transform_indices = @transform_2, window_bounds = array<i64: 128, 128>}, {pipeline_mode = #tpu.pipeline_mode<synchronous>, transform_indices = @transform_3, window_bounds = array<i64: 128, 128>}, {pipeline_mode = #tpu.pipeline_mode<synchronous>, transform_indices = @transform_4, window_bounds = array<i64: 128, 128>}, {pipeline_mode = #tpu.pipeline_mode<synchronous>, transform_indices = @transform_5, window_bounds = array<i64: 1, 128>}, {transform_indices = @transform_6, window_bounds = array<i64: 128, 128>}]} {
    %c0_i32 = arith.constant 0 : i32
    %0 = arith.cmpi eq, %arg1, %c0_i32 : i32
    %1 = arith.extui %0 : i1 to i32
    %c0_i32_0 = arith.constant 0 : i32
    %2 = arith.cmpi ne, %1, %c0_i32_0 : i32
    scf.if %2 {
      %cst_10 = arith.constant 0.000000e+00 : f32
      %12 = vector.broadcast %cst_10 : f32 to vector<128x128xf32>
      %c0_11 = arith.constant 0 : index
      %c0_12 = arith.constant 0 : index
      %13 = vector.load %arg9[%c0_11, %c0_12] : memref<128x128xf32, #tpu.memory_space<vmem>>, vector<128x128xf32>
      tpu.vector_store %arg9[%c0_11, %c0_12], %12 {strides = array<i32>} : memref<128x128xf32, #tpu.memory_space<vmem>>, vector<128x128xf32>,
    } else {
    }
    %c0 = arith.constant 0 : index
    %c0_1 = arith.constant 0 : index
    %3 = vector.load %arg9[%c0, %c0_1] : memref<128x128xf32, #tpu.memory_space<vmem>>, vector<128x128xf32>
    %c0_2 = arith.constant 0 : index
    %c0_3 = arith.constant 0 : index
    %4 = vector.load %arg2[%c0_2, %c0_3] : memref<128x128xbf16, #tpu.memory_space<vmem>>, vector<128x128xbf16>
    %c0_4 = arith.constant 0 : index
    %c0_5 = arith.constant 0 : index
    %5 = vector.load %arg3[%c0_4, %c0_5] : memref<128x128xbf16, #tpu.memory_space<vmem>>, vector<128x128xbf16>
    %cst = arith.constant dense<0.000000e+00> : vector<128x128xf32>
    %6 = tpu.matmul %4, %5, %cst {dimension_numbers = #tpu.dot_dimension_numbers<[1], [0], [0], [1], [0, 0, 1, 1], [], []>} : vector<128x128xbf16>, vector<128x128xbf16>, vector<128x128xf32> -> vector<128x128xf32>
    %7 = arith.addf %3, %6 : vector<128x128xf32>
    %c0_6 = arith.constant 0 : index
    %c0_7 = arith.constant 0 : index
    %8 = vector.load %arg9[%c0_6, %c0_7] : memref<128x128xf32, #tpu.memory_space<vmem>>, vector<128x128xf32>
    tpu.vector_store %arg9[%c0_6, %c0_7], %7 {strides = array<i32>} : memref<128x128xf32, #tpu.memory_space<vmem>>, vector<128x128xf32>,
    %c0_i32_8 = arith.constant 0 : i32
    %9 = arith.cmpi eq, %arg1, %c0_i32_8 : i32
    %10 = arith.extui %9 : i1 to i32
    %c0_i32_9 = arith.constant 0 : i32
    %11 = arith.cmpi ne, %10, %c0_i32_9 : i32
    scf.if %11 {
      %c0_10 = arith.constant 0 : index
      %c0_11 = arith.constant 0 : index
      %12 = vector.load %arg9[%c0_10, %c0_11] : memref<128x128xf32, #tpu.memory_space<vmem>>, vector<128x128xf32>
      %13 = arith.truncf %12 : vector<128x128xf32> to vector<128x128xbf16>
      %c0_12 = arith.constant 0 : index
      %c0_13 = arith.constant 0 : index
      %14 = vector.load %arg5[%c0_12, %c0_13] : memref<128x128xbf16, #tpu.memory_space<vmem>>, vector<128x128xbf16>
      %cst_14 = arith.constant dense<0.000000e+00> : vector<128x128xf32>
      %15 = tpu.matmul %13, %14, %cst_14 {dimension_numbers = #tpu.dot_dimension_numbers<[1], [0], [0], [1], [0, 0, 1, 1], [], []>} : vector<128x128xbf16>, vector<128x128xbf16>, vector<128x128xf32> -> vector<128x128xf32>
      %c0_15 = arith.constant 0 : index
      %c0_16 = arith.constant 0 : index
      %16 = vector.load %arg4[%c0_15, %c0_16] : memref<128x128xbf16, #tpu.memory_space<vmem>>, vector<128x128xbf16>
      %c0_17 = arith.constant 0 : index
      %c0_18 = arith.constant 0 : index
      %17 = vector.load %arg6[%c0_17, %c0_18] : memref<128x128xbf16, #tpu.memory_space<vmem>>, vector<128x128xbf16>
      %cst_19 = arith.constant dense<0.000000e+00> : vector<128x128xf32>
      %18 = tpu.matmul %16, %17, %cst_19 {dimension_numbers = #tpu.dot_dimension_numbers<[1], [0], [0], [1], [0, 0, 1, 1], [], []>} : vector<128x128xbf16>, vector<128x128xbf16>, vector<128x128xf32> -> vector<128x128xf32>
      %19 = arith.addf %15, %18 : vector<128x128xf32>
      %c0_20 = arith.constant 0 : index
      %c0_21 = arith.constant 0 : index
      %20 = vector.load %arg7[%c0_20, %c0_21] : memref<1x128xf32, #tpu.memory_space<vmem>>, vector<1x128xf32>
      %21 = vector.broadcast %20 : vector<1x128xf32> to vector<128x128xf32>
      %22 = arith.addf %19, %21 : vector<128x128xf32>
      %cst_22 = arith.constant 0.000000e+00 : f32
      %23 = vector.broadcast %cst_22 : f32 to vector<128x128xf32>
      %24 = arith.maximumf %22, %23 : vector<128x128xf32>
      %25 = arith.truncf %24 : vector<128x128xf32> to vector<128x128xbf16>
      %c0_23 = arith.constant 0 : index
      %c0_24 = arith.constant 0 : index
      %26 = vector.load %arg8[%c0_23, %c0_24] : memref<128x128xbf16, #tpu.memory_space<vmem>>, vector<128x128xbf16>
      tpu.vector_store %arg8[%c0_23, %c0_24], %25 {strides = array<i32>} : memref<128x128xbf16, #tpu.memory_space<vmem>>, vector<128x128xbf16>,
    } else {
    }
    return
  }
  func.func @transform_0(%arg0: i32, %arg1: i32) -> (i32, i32) {
    %c0_i32 = arith.constant 0 : i32
    return %arg0, %arg1 : i32, i32
  }
  func.func @transform_1(%arg0: i32, %arg1: i32) -> (i32, i32) {
    %c0_i32 = arith.constant 0 : i32
    %c0_i32_0 = arith.constant 0 : i32
    return %arg1, %c0_i32 : i32, i32
  }
  func.func @transform_2(%arg0: i32, %arg1: i32) -> (i32, i32) {
    %c0_i32 = arith.constant 0 : i32
    %c0_i32_0 = arith.constant 0 : i32
    return %arg0, %c0_i32 : i32, i32
  }
  func.func @transform_3(%arg0: i32, %arg1: i32) -> (i32, i32) {
    %c0_i32 = arith.constant 0 : i32
    %c0_i32_0 = arith.constant 0 : i32
    %c0_i32_1 = arith.constant 0 : i32
    return %c0_i32, %c0_i32_0 : i32, i32
  }
  func.func @transform_4(%arg0: i32, %arg1: i32) -> (i32, i32) {
    %c0_i32 = arith.constant 0 : i32
    %c0_i32_0 = arith.constant 0 : i32
    %c0_i32_1 = arith.constant 0 : i32
    return %c0_i32, %c0_i32_0 : i32, i32
  }
  func.func @transform_5(%arg0: i32, %arg1: i32) -> (i32, i32) {
    %c0_i32 = arith.constant 0 : i32
    %c0_i32_0 = arith.constant 0 : i32
    %c0_i32_1 = arith.constant 0 : i32
    return %c0_i32, %c0_i32_0 : i32, i32
  }
  func.func @transform_6(%arg0: i32, %arg1: i32) -> (i32, i32) {
    %c0_i32 = arith.constant 0 : i32
    %c0_i32_0 = arith.constant 0 : i32
    return %arg0, %c0_i32 : i32, i32
  }
}

</mosaic_0001>

<llo_original>
// kernel: cluster_gcn_forward.3
$region0: #{cluster_gcn_forward.3}
  #allocation0 [shape = 'u32[]', space=smem, size = 0x4, offset = 0x4, fixed_abs, tag = 'smem constant byte address 0x4 - core index']
  #allocation1 [shape = 'u32[144,128]{1,0:T(1,128)}', space=vmem, size = 0x12000, scoped, tag = 'internal scratch']
  #allocation2 [shape = 'f32[128,128]{1,0:T(8,128)}', space=vmem, size = 0x10000, scoped, tag = 'scratch operand']
  %s0 = inlined_call_operand.vmem [shape: bf16[128,128], index: 0, kind: input, shape index: {}]
  %s1 = inlined_call_operand.vmem [shape: bf16[128,128], index: 1, kind: input, shape index: {}, may-alias: {1,2}]
  %s2 = inlined_call_operand.vmem [shape: bf16[128,128], index: 2, kind: input, shape index: {}, may-alias: {1,2}]
  %s3 = inlined_call_operand.vmem [shape: bf16[128,128], index: 3, kind: input, shape index: {}]
  %s4 = inlined_call_operand.vmem [shape: bf16[128,128], index: 4, kind: input, shape index: {}]
  %s5 = inlined_call_operand.vmem [shape: f32[1,128], index: 5, kind: input, shape index: {}]
  %s6 = inlined_call_operand.vmem [shape: bf16[128,128], index: 6, kind: output, shape index: {}]
  %s7 = sld [smem:[#allocation0]]
  $region42: #{cluster_gcn_forward.3} parent=0
    _
  %s9 = ssub.s32 1, %s7
  %s10 = scalar_select 0, %s9, %s7
  // Predicated region
  $region2: #{cluster_gcn_forward.3} parent=0 // pred_check
    _
  $region3: #{cluster_gcn_forward.3} parent=0 // pred_check_branch
    %12 = sbr.rel (0) target = $region5
  $region4: #{cluster_gcn_forward.3} parent=0 // pred_region
    _
  $region5: #{cluster_gcn_forward.3} parent=0 // pred_fallthru
    _
  // Predicated region
  $region6: #{cluster_gcn_forward.3} parent=0 // pred_check
    _
  $region7: #{cluster_gcn_forward.3} parent=0 // pred_check_branch
    %14 = sbr.rel (0) target = $region9
  $region8: #{cluster_gcn_forward.3} parent=0 // pred_region
    _
  $region9: #{cluster_gcn_forward.3} parent=0 // pred_fallthru
    _
  // Predicated region
  $region10: #{cluster_gcn_forward.3} parent=0 // pred_check
    _
  $region11: #{cluster_gcn_forward.3} parent=0 // pred_check_branch
    %16 = sbr.rel (0) target = $region13
  $region12: #{cluster_gcn_forward.3} parent=0 // pred_region
    _
  $region13: #{cluster_gcn_forward.3} parent=0 // pred_fallthru
    _
  // Predicated region
  $region14: #{cluster_gcn_forward.3} parent=0 // pred_check
    _
  $region15: #{cluster_gcn_forward.3} parent=0 // pred_check_branch
    %18 = sbr.rel (0) target = $region17
  $region16: #{cluster_gcn_forward.3} parent=0 // pred_region
    _
  $region17: #{cluster_gcn_forward.3} parent=0 // pred_fallthru
    _
  // Predicated region
  $region18: #{cluster_gcn_forward.3} parent=0 // pred_check
    _
  $region19: #{cluster_gcn_forward.3} parent=0 // pred_check_branch
    %20 = sbr.rel (0) target = $region21
  $region20: #{cluster_gcn_forward.3} parent=0 // pred_region
    _
  $region21: #{cluster_gcn_forward.3} parent=0 // pred_fallthru
    _
  // Predicated region
  $region22: #{cluster_gcn_forward.3} parent=0 // pred_check
    _
  $region23: #{cluster_gcn_forward.3} parent=0 // pred_check_branch
    %22 = sbr.rel (0) target = $region25
  $region24: #{cluster_gcn_forward.3} parent=0 // pred_region
    _
  $region25: #{cluster_gcn_forward.3} parent=0 // pred_fallthru
    _
  %p24 = scmp.eq.s32.totalorder 0, 0
  // Predicated region
  $region26: #{cluster_gcn_forward.3} parent=0 // pred_check
    %p25 = pneg %p24
  $region27: #{cluster_gcn_forward.3} parent=0 // pred_check_branch
    %27 = sbr.rel (%p25) target = $region29
  $region28: #{cluster_gcn_forward.3} parent=0 // pred_region
    %28 = vst [vmem:[#allocation2] sm:$0xff] 0.0
    %29 = vst [vmem:[#allocation2 + $0x8] sm:$0xff] 0.0
    %30 = vst [vmem:[#allocation2 + $0x10] sm:$0xff] 0.0
    %31 = vst [vmem:[#allocation2 + $0x18] sm:$0xff] 0.0
    %32 = vst [vmem:[#allocation2 + $0x20] sm:$0xff] 0.0
    %33 = vst [vmem:[#allocation2 + $0x28] sm:$0xff] 0.0
    %34 = vst [vmem:[#allocation2 + $0x30] sm:$0xff] 0.0
    %35 = vst [vmem:[#allocation2 + $0x38] sm:$0xff] 0.0
    %36 = vst [vmem:[#allocation2 + $0x40] sm:$0xff] 0.0
    %37 = vst [vmem:[#allocation2 + $0x48] sm:$0xff] 0.0
    %38 = vst [vmem:[#allocation2 + $0x50] sm:$0xff] 0.0
    %39 = vst [vmem:[#allocation2 + $0x58] sm:$0xff] 0.0
    %40 = vst [vmem:[#allocation2 + $0x60] sm:$0xff] 0.0
    %41 = vst [vmem:[#allocation2 + $0x68] sm:$0xff] 0.0
    %42 = vst [vmem:[#allocation2 + $0x70] sm:$0xff] 0.0
    %43 = vst [vmem:[#allocation2 + $0x78] sm:$0xff] 0.0
  $region29: #{cluster_gcn_forward.3} parent=0 // pred_fallthru
    _
  %v44 = vld [vmem:[#allocation2] sm:$0xff]
  %v45 = vld [vmem:[#allocation2 + $0x8] sm:$0xff]
  %v46 = vld [vmem:[#allocation2 + $0x10] sm:$0xff]
  %v47 = vld [vmem:[#allocation2 + $0x18] sm:$0xff]
  %v48 = vld [vmem:[#allocation2 + $0x20] sm:$0xff]
  %v49 = vld [vmem:[#allocation2 + $0x28] sm:$0xff]
  %v50 = vld [vmem:[#allocation2 + $0x30] sm:$0xff]
  %v51 = vld [vmem:[#allocation2 + $0x38] sm:$0xff]
  %v52 = vld [vmem:[#allocation2 + $0x40] sm:$0xff]
  %v53 = vld [vmem:[#allocation2 + $0x48] sm:$0xff]
  %v54 = vld [vmem:[#allocation2 + $0x50] sm:$0xff]
  %v55 = vld [vmem:[#allocation2 + $0x58] sm:$0xff]
  %v56 = vld [vmem:[#allocation2 + $0x60] sm:$0xff]
  %v57 = vld [vmem:[#allocation2 + $0x68] sm:$0xff]
  %v58 = vld [vmem:[#allocation2 + $0x70] sm:$0xff]
  %v59 = vld [vmem:[#allocation2 + $0x78] sm:$0xff]
  %v60 = vld [vmem:[%s0] sm:$0xf]
  %v61 = vld [vmem:[%s0 + $0x4] sm:$0xf]
  %v62 = vld [vmem:[%s0 + $0x8] sm:$0xf]
  %v63 = vld [vmem:[%s0 + $0xc] sm:$0xf]
  %v64 = vld [vmem:[%s0 + $0x10] sm:$0xf]
  %v65 = vld [vmem:[%s0 + $0x14] sm:$0xf]
  %v66 = vld [vmem:[%s0 + $0x18] sm:$0xf]
  %v67 = vld [vmem:[%s0 + $0x1c] sm:$0xf]
  %v68 = vld [vmem:[%s0 + $0x20] sm:$0xf]
  %v69 = vld [vmem:[%s0 + $0x24] sm:$0xf]
  %v70 = vld [vmem:[%s0 + $0x28] sm:$0xf]
  %v71 = vld [vmem:[%s0 + $0x2c] sm:$0xf]
  %v72 = vld [vmem:[%s0 + $0x30] sm:$0xf]
  %v73 = vld [vmem:[%s0 + $0x34] sm:$0xf]
  %v74 = vld [vmem:[%s0 + $0x38] sm:$0xf]
  %v75 = vld [vmem:[%s0 + $0x3c] sm:$0xf]
  %v76 = vld [vmem:[%s1] sm:$0xf]
  %v77 = vld [vmem:[%s1 + $0x4] sm:$0xf]
  %v78 = vld [vmem:[%s1 + $0x8] sm:$0xf]
  %v79 = vld [vmem:[%s1 + $0xc] sm:$0xf]
  %v80 = vld [vmem:[%s1 + $0x10] sm:$0xf]
  %v81 = vld [vmem:[%s1 + $0x14] sm:$0xf]
  %v82 = vld [vmem:[%s1 + $0x18] sm:$0xf]
  %v83 = vld [vmem:[%s1 + $0x1c] sm:$0xf]
  %v84 = vld [vmem:[%s1 + $0x20] sm:$0xf]
  %v85 = vld [vmem:[%s1 + $0x24] sm:$0xf]
  %v86 = vld [vmem:[%s1 + $0x28] sm:$0xf]
  %v87 = vld [vmem:[%s1 + $0x2c] sm:$0xf]
  %v88 = vld [vmem:[%s1 + $0x30] sm:$0xf]
  %v89 = vld [vmem:[%s1 + $0x34] sm:$0xf]
  %v90 = vld [vmem:[%s1 + $0x38] sm:$0xf]
  %v91 = vld [vmem:[%s1 + $0x3c] sm:$0xf]
  %v108 = vunpack.c.l.b16 %v60
  %v109 = vunpack.c.l.b16 %v61
  %v110 = vunpack.c.l.b16 %v62
  %v111 = vunpack.c.l.b16 %v63
  %v112 = vunpack.c.l.b16 %v64
  %v113 = vunpack.c.l.b16 %v65
  %v114 = vunpack.c.l.b16 %v66
  %v115 = vunpack.c.l.b16 %v67
  %v116 = vunpack.c.l.b16 %v68
  %v117 = vunpack.c.l.b16 %v69
  %v118 = vunpack.c.l.b16 %v70
  %v119 = vunpack.c.l.b16 %v71
  %v120 = vunpack.c.l.b16 %v72
  %v121 = vunpack.c.l.b16 %v73
  %v122 = vunpack.c.l.b16 %v74
  %v123 = vunpack.c.l.b16 %v75
  %v124 = vpack.c.b16 %v109, %v108
  %v125 = vpack.c.b16 %v111, %v110
  %v126 = vpack.c.b16 %v113, %v112
  %v127 = vpack.c.b16 %v115, %v114
  %v128 = vpack.c.b16 %v117, %v116
  %v129 = vpack.c.b16 %v119, %v118
  %v130 = vpack.c.b16 %v121, %v120
  %v131 = vpack.c.b16 %v123, %v122
  %v156 = vunpack.c.l.b16 %v76
  %v157 = vunpack.c.l.b16 %v77
  %v158 = vunpack.c.l.b16 %v78
  %v159 = vunpack.c.l.b16 %v79
  %v160 = vunpack.c.l.b16 %v80
  %v161 = vunpack.c.l.b16 %v81
  %v162 = vunpack.c.l.b16 %v82
  %v163 = vunpack.c.l.b16 %v83
  %v164 = vunpack.c.l.b16 %v84
  %v165 = vunpack.c.l.b16 %v85
  %v166 = vunpack.c.l.b16 %v86
  %v167 = vunpack.c.l.b16 %v87
  %v168 = vunpack.c.l.b16 %v88
  %v169 = vunpack.c.l.b16 %v89
  %v170 = vunpack.c.l.b16 %v90
  %v171 = vunpack.c.l.b16 %v91
  %v172 = vpack.c.b16 %v157, %v156
  %v173 = vpack.c.b16 %v159, %v158
  %v174 = vpack.c.b16 %v161, %v160
  %v175 = vpack.c.b16 %v163, %v162
  %v176 = vpack.c.b16 %v165, %v164
  %v177 = vpack.c.b16 %v167, %v166
  %v178 = vpack.c.b16 %v169, %v168
  %v179 = vpack.c.b16 %v171, %v170
  %188 = vmatprep.subr.bf16.mxu0 0
  %189 = vmatpush1.bf16.msra.mxu0 %v179
  %190 = vmatprep.subr.bf16.mxu0 0
  %191 = vmatpush1.bf16.msra.mxu0 %v178
  %192 = vmatprep.subr.bf16.mxu0 0
  %193 = vmatpush1.bf16.msra.mxu0 %v177
  %194 = vmatprep.subr.bf16.mxu0 0
  %195 = vmatpush1.bf16.msra.mxu0 %v176
  %196 = vmatprep.subr.bf16.mxu0 0
  %197 = vmatpush1.bf16.msra.mxu0 %v175
  %198 = vmatprep.subr.bf16.mxu0 0
  %199 = vmatpush1.bf16.msra.mxu0 %v174
  %200 = vmatprep.subr.bf16.mxu0 0
  %201 = vmatpush1.bf16.msra.mxu0 %v173
  %202 = vmatprep.subr.bf16.mxu0 0
  %203 = vmatpush1.bf16.msra.mxu0 %v172
  %204 = vmatprep.subr.bf16.mxu0 0
  %205 = vmatpush2.bf16.msra.mxu0 0
  %206 = vmatprep.subr.bf16.mxu0 0
  %207 = vmatpush2.bf16.msra.mxu0 0
  %208 = vmatprep.subr.bf16.mxu0 0
  %209 = vmatpush2.bf16.msra.mxu0 0
  %210 = vmatprep.subr.bf16.mxu0 0
  %211 = vmatpush2.bf16.msra.mxu0 0
  %212 = vmatprep.subr.bf16.mxu0 0
  %213 = vmatpush2.bf16.msra.mxu0 0
  %214 = vmatprep.subr.bf16.mxu0 0
  %215 = vmatpush2.bf16.msra.mxu0 0
  %216 = vmatprep.subr.bf16.mxu0 0
  %217 = vmatpush2.bf16.msra.mxu0 0
  %218 = vmatprep.subr.bf16.mxu0 0
  %219 = vmatpush2.bf16.msra.mxu0 0
  %220 = vmatprep.mubr.bf16.mxu0 0
  %221 = vmatmul.mubr.bf16.gmra.mxu0 %v124
  %v222 = vpop.f32.mrf.mxu0
  %v223 = vadd.f32 0.0, %v222
  %v224 = vpop.f32.mrf.mxu0
  %v225 = vpop.f32.mrf.mxu0
  %v226 = vadd.f32 0.0, %v225
  %v227 = vpop.f32.mrf.mxu0
  %228 = vmatprep.mubr.bf16.mxu0 0
  %229 = vmatmul.mubr.bf16.gmra.mxu0 %v125
  %v230 = vpop.f32.mrf.mxu0
  %v231 = vadd.f32 0.0, %v230
  %v232 = vpop.f32.mrf.mxu0
  %v233 = vpop.f32.mrf.mxu0
  %v234 = vadd.f32 0.0, %v233
  %v235 = vpop.f32.mrf.mxu0
  %236 = vmatprep.mubr.bf16.mxu0 0
  %237 = vmatmul.mubr.bf16.gmra.mxu0 %v126
  %v238 = vpop.f32.mrf.mxu0
  %v239 = vadd.f32 0.0, %v238
  %v240 = vpop.f32.mrf.mxu0
  %v241 = vpop.f32.mrf.mxu0
  %v242 = vadd.f32 0.0, %v241
  %v243 = vpop.f32.mrf.mxu0
  %244 = vmatprep.mubr.bf16.mxu0 0
  %245 = vmatmul.mubr.bf16.gmra.mxu0 %v127
  %v246 = vpop.f32.mrf.mxu0
  %v247 = vadd.f32 0.0, %v246
  %v248 = vpop.f32.mrf.mxu0
  %v249 = vpop.f32.mrf.mxu0
  %v250 = vadd.f32 0.0, %v249
  %v251 = vpop.f32.mrf.mxu0
  %252 = vmatprep.mubr.bf16.mxu0 0
  %253 = vmatmul.mubr.bf16.gmra.mxu0 %v128
  %v254 = vpop.f32.mrf.mxu0
  %v255 = vadd.f32 0.0, %v254
  %v256 = vpop.f32.mrf.mxu0
  %v257 = vpop.f32.mrf.mxu0
  %v258 = vadd.f32 0.0, %v257
  %v259 = vpop.f32.mrf.mxu0
  %260 = vmatprep.mubr.bf16.mxu0 0
  %261 = vmatmul.mubr.bf16.gmra.mxu0 %v129
  %v262 = vpop.f32.mrf.mxu0
  %v263 = vadd.f32 0.0, %v262
  %v264 = vpop.f32.mrf.mxu0
  %v265 = vpop.f32.mrf.mxu0
  %v266 = vadd.f32 0.0, %v265
  %v267 = vpop.f32.mrf.mxu0
  %268 = vmatprep.mubr.bf16.mxu0 0
  %269 = vmatmul.mubr.bf16.gmra.mxu0 %v130
  %v270 = vpop.f32.mrf.mxu0
  %v271 = vadd.f32 0.0, %v270
  %v272 = vpop.f32.mrf.mxu0
  %v273 = vpop.f32.mrf.mxu0
  %v274 = vadd.f32 0.0, %v273
  %v275 = vpop.f32.mrf.mxu0
  %276 = vmatprep.mubr.bf16.mxu0 0
  %277 = vmatmul.mubr.bf16.gmra.mxu0 %v131
  %v278 = vpop.f32.mrf.mxu0
  %v279 = vadd.f32 0.0, %v278
  %v280 = vpop.f32.mrf.mxu0
  %v281 = vpop.f32.mrf.mxu0
  %v282 = vadd.f32 0.0, %v281
  %v283 = vpop.f32.mrf.mxu0
  %284 = vdwg.mxu0
  %v285 = vadd.f32 %v44, %v223
  %v286 = vadd.f32 %v45, %v226
  %v287 = vadd.f32 %v46, %v231
  %v288 = vadd.f32 %v47, %v234
  %v289 = vadd.f32 %v48, %v239
  %v290 = vadd.f32 %v49, %v242
  %v291 = vadd.f32 %v50, %v247
  %v292 = vadd.f32 %v51, %v250
  %v293 = vadd.f32 %v52, %v255
  %v294 = vadd.f32 %v53, %v258
  %v295 = vadd.f32 %v54, %v263
  %v296 = vadd.f32 %v55, %v266
  %v297 = vadd.f32 %v56, %v271
  %v298 = vadd.f32 %v57, %v274
  %v299 = vadd.f32 %v58, %v279
  %v300 = vadd.f32 %v59, %v282
  %301 = vst [vmem:[#allocation2] sm:$0xff] %v285
  %302 = vst [vmem:[#allocation2 + $0x8] sm:$0xff] %v286
  %303 = vst [vmem:[#allocation2 + $0x10] sm:$0xff] %v287
  %304 = vst [vmem:[#allocation2 + $0x18] sm:$0xff] %v288
  %305 = vst [vmem:[#allocation2 + $0x20] sm:$0xff] %v289
  %306 = vst [vmem:[#allocation2 + $0x28] sm:$0xff] %v290
  %307 = vst [vmem:[#allocation2 + $0x30] sm:$0xff] %v291
  %308 = vst [vmem:[#allocation2 + $0x38] sm:$0xff] %v292
  %309 = vst [vmem:[#allocation2 + $0x40] sm:$0xff] %v293
  %310 = vst [vmem:[#allocation2 + $0x48] sm:$0xff] %v294
  %311 = vst [vmem:[#allocation2 + $0x50] sm:$0xff] %v295
  %312 = vst [vmem:[#allocation2 + $0x58] sm:$0xff] %v296
  %313 = vst [vmem:[#allocation2 + $0x60] sm:$0xff] %v297
  %314 = vst [vmem:[#allocation2 + $0x68] sm:$0xff] %v298
  %315 = vst [vmem:[#allocation2 + $0x70] sm:$0xff] %v299
  %316 = vst [vmem:[#allocation2 + $0x78] sm:$0xff] %v300
  // Predicated region
  $region30: #{cluster_gcn_forward.3} parent=0 // pred_check
    %p317 = pneg %p24
  $region31: #{cluster_gcn_forward.3} parent=0 // pred_check_branch
    %319 = sbr.rel (%p317) target = $region33
  $region32: #{cluster_gcn_forward.3} parent=0 // pred_region
    %v320 = vld [vmem:[#allocation2] sm:$0xff]
    %v321 = vld [vmem:[#allocation2 + $0x8] sm:$0xff]
    %v322 = vld [vmem:[#allocation2 + $0x10] sm:$0xff]
    %v323 = vld [vmem:[#allocation2 + $0x18] sm:$0xff]
    %v324 = vld [vmem:[#allocation2 + $0x20] sm:$0xff]
    %v325 = vld [vmem:[#allocation2 + $0x28] sm:$0xff]
    %v326 = vld [vmem:[#allocation2 + $0x30] sm:$0xff]
    %v327 = vld [vmem:[#allocation2 + $0x38] sm:$0xff]
    %v328 = vld [vmem:[#allocation2 + $0x40] sm:$0xff]
    %v329 = vld [vmem:[#allocation2 + $0x48] sm:$0xff]
    %v330 = vld [vmem:[#allocation2 + $0x50] sm:$0xff]
    %v331 = vld [vmem:[#allocation2 + $0x58] sm:$0xff]
    %v332 = vld [vmem:[#allocation2 + $0x60] sm:$0xff]
    %v333 = vld [vmem:[#allocation2 + $0x68] sm:$0xff]
    %v334 = vld [vmem:[#allocation2 + $0x70] sm:$0xff]
    %v335 = vld [vmem:[#allocation2 + $0x78] sm:$0xff]
    %v336 = vpack.c.bf16 %v321, %v320
    %v337 = vpack.c.bf16 %v323, %v322
    %v338 = vpack.c.bf16 %v325, %v324
    %v339 = vpack.c.bf16 %v327, %v326
    %v340 = vpack.c.bf16 %v329, %v328
    %v341 = vpack.c.bf16 %v331, %v330
    %v342 = vpack.c.bf16 %v333, %v332
    %v343 = vpack.c.bf16 %v335, %v334
    %v344 = vld [vmem:[%s3] sm:$0xf]
    %v345 = vld [vmem:[%s3 + $0x4] sm:$0xf]
    %v346 = vld [vmem:[%s3 + $0x8] sm:$0xf]
    %v347 = vld [vmem:[%s3 + $0xc] sm:$0xf]
    %v348 = vld [vmem:[%s3 + $0x10] sm:$0xf]
    %v349 = vld [vmem:[%s3 + $0x14] sm:$0xf]
    %v350 = vld [vmem:[%s3 + $0x18] sm:$0xf]
    %v351 = vld [vmem:[%s3 + $0x1c] sm:$0xf]
    %v352 = vld [vmem:[%s3 + $0x20] sm:$0xf]
    %v353 = vld [vmem:[%s3 + $0x24] sm:$0xf]
    %v354 = vld [vmem:[%s3 + $0x28] sm:$0xf]
    %v355 = vld [vmem:[%s3 + $0x2c] sm:$0xf]
    %v356 = vld [vmem:[%s3 + $0x30] sm:$0xf]
    %v357 = vld [vmem:[%s3 + $0x34] sm:$0xf]
    %v358 = vld [vmem:[%s3 + $0x38] sm:$0xf]
    %v359 = vld [vmem:[%s3 + $0x3c] sm:$0xf]
    %v360 = vld [vmem:[%s2] sm:$0xf]
    %v361 = vld [vmem:[%s2 + $0x4] sm:$0xf]
    %v362 = vld [vmem:[%s2 + $0x8] sm:$0xf]
    %v363 = vld [vmem:[%s2 + $0xc] sm:$0xf]
    %v364 = vld [vmem:[%s2 + $0x10] sm:$0xf]
    %v365 = vld [vmem:[%s2 + $0x14] sm:$0xf]
    %v366 = vld [vmem:[%s2 + $0x18] sm:$0xf]
    %v367 = vld [vmem:[%s2 + $0x1c] sm:$0xf]
    %v368 = vld [vmem:[%s2 + $0x20] sm:$0xf]
    %v369 = vld [vmem:[%s2 + $0x24] sm:$0xf]
    %v370 = vld [vmem:[%s2 + $0x28] sm:$0xf]
    %v371 = vld [vmem:[%s2 + $0x2c] sm:$0xf]
    %v372 = vld [vmem:[%s2 + $0x30] sm:$0xf]
    %v373 = vld [vmem:[%s2 + $0x34] sm:$0xf]
    %v374 = vld [vmem:[%s2 + $0x38] sm:$0xf]
    %v375 = vld [vmem:[%s2 + $0x3c] sm:$0xf]
    %v376 = vld [vmem:[%s4] sm:$0xf]
    %v377 = vld [vmem:[%s4 + $0x4] sm:$0xf]
    %v378 = vld [vmem:[%s4 + $0x8] sm:$0xf]
    %v379 = vld [vmem:[%s4 + $0xc] sm:$0xf]
    %v380 = vld [vmem:[%s4 + $0x10] sm:$0xf]
    %v381 = vld [vmem:[%s4 + $0x14] sm:$0xf]
    %v382 = vld [vmem:[%s4 + $0x18] sm:$0xf]
    %v383 = vld [vmem:[%s4 + $0x1c] sm:$0xf]
    %v384 = vld [vmem:[%s4 + $0x20] sm:$0xf]
    %v385 = vld [vmem:[%s4 + $0x24] sm:$0xf]
    %v386 = vld [vmem:[%s4 + $0x28] sm:$0xf]
    %v387 = vld [vmem:[%s4 + $0x2c] sm:$0xf]
    %v388 = vld [vmem:[%s4 + $0x30] sm:$0xf]
    %v389 = vld [vmem:[%s4 + $0x34] sm:$0xf]
    %v390 = vld [vmem:[%s4 + $0x38] sm:$0xf]
    %v391 = vld [vmem:[%s4 + $0x3c] sm:$0xf]
    %v408 = vunpack.c.l.b16 %v360
    %v409 = vunpack.c.l.b16 %v361
    %v410 = vunpack.c.l.b16 %v362
    %v411 = vunpack.c.l.b16 %v363
    %v412 = vunpack.c.l.b16 %v364
    %v413 = vunpack.c.l.b16 %v365
    %v414 = vunpack.c.l.b16 %v366
    %v415 = vunpack.c.l.b16 %v367
    %v416 = vunpack.c.l.b16 %v368
    %v417 = vunpack.c.l.b16 %v369
    %v418 = vunpack.c.l.b16 %v370
    %v419 = vunpack.c.l.b16 %v371
    %v420 = vunpack.c.l.b16 %v372
    %v421 = vunpack.c.l.b16 %v373
    %v422 = vunpack.c.l.b16 %v374
    %v423 = vunpack.c.l.b16 %v375
    %v424 = vpack.c.b16 %v409, %v408
    %v425 = vpack.c.b16 %v411, %v410
    %v426 = vpack.c.b16 %v413, %v412
    %v427 = vpack.c.b16 %v415, %v414
    %v428 = vpack.c.b16 %v417, %v416
    %v429 = vpack.c.b16 %v419, %v418
    %v430 = vpack.c.b16 %v421, %v420
    %v431 = vpack.c.b16 %v423, %v422
    %v456 = vunpack.c.l.b16 %v376
    %v457 = vunpack.c.l.b16 %v377
    %v458 = vunpack.c.l.b16 %v378
    %v459 = vunpack.c.l.b16 %v379
    %v460 = vunpack.c.l.b16 %v380
    %v461 = vunpack.c.l.b16 %v381
    %v462 = vunpack.c.l.b16 %v382
    %v463 = vunpack.c.l.b16 %v383
    %v464 = vunpack.c.l.b16 %v384
    %v465 = vunpack.c.l.b16 %v385
    %v466 = vunpack.c.l.b16 %v386
    %v467 = vunpack.c.l.b16 %v387
    %v468 = vunpack.c.l.b16 %v388
    %v469 = vunpack.c.l.b16 %v389
    %v470 = vunpack.c.l.b16 %v390
    %v471 = vunpack.c.l.b16 %v391
    %v472 = vpack.c.b16 %v457, %v456
    %v473 = vpack.c.b16 %v459, %v458
    %v474 = vpack.c.b16 %v461, %v460
    %v475 = vpack.c.b16 %v463, %v462
    %v476 = vpack.c.b16 %v465, %v464
    %v477 = vpack.c.b16 %v467, %v466
    %v478 = vpack.c.b16 %v469, %v468
    %v479 = vpack.c.b16 %v471, %v470
    %488 = vmatprep.subr.bf16.mxu0 0
    %489 = vmatpush1.bf16.msra.mxu0 %v479
    %490 = vmatprep.subr.bf16.mxu0 0
    %491 = vmatpush1.bf16.msra.mxu0 %v478
    %492 = vmatprep.subr.bf16.mxu0 0
    %493 = vmatpush1.bf16.msra.mxu0 %v477
    %494 = vmatprep.subr.bf16.mxu0 0
    %495 = vmatpush1.bf16.msra.mxu0 %v476
    %496 = vmatprep.subr.bf16.mxu0 0
    %497 = vmatpush1.bf16.msra.mxu0 %v475
    %498 = vmatprep.subr.bf16.mxu0 0
    %499 = vmatpush1.bf16.msra.mxu0 %v474
    %500 = vmatprep.subr.bf16.mxu0 0
    %501 = vmatpush1.bf16.msra.mxu0 %v473
    %502 = vmatprep.subr.bf16.mxu0 0
    %503 = vmatpush1.bf16.msra.mxu0 %v472
    %504 = vmatprep.subr.bf16.mxu0 0
    %505 = vmatpush2.bf16.msra.mxu0 0
    %506 = vmatprep.subr.bf16.mxu0 0
    %507 = vmatpush2.bf16.msra.mxu0 0
    %508 = vmatprep.subr.bf16.mxu0 0
    %509 = vmatpush2.bf16.msra.mxu0 0
    %510 = vmatprep.subr.bf16.mxu0 0
    %511 = vmatpush2.bf16.msra.mxu0 0
    %512 = vmatprep.subr.bf16.mxu0 0
    %513 = vmatpush2.bf16.msra.mxu0 0
    %514 = vmatprep.subr.bf16.mxu0 0
    %515 = vmatpush2.bf16.msra.mxu0 0
    %516 = vmatprep.subr.bf16.mxu0 0
    %517 = vmatpush2.bf16.msra.mxu0 0
    %518 = vmatprep.subr.bf16.mxu0 0
    %519 = vmatpush2.bf16.msra.mxu0 0
    %520 = vmatprep.mubr.bf16.mxu0 0
    %521 = vmatmul.mubr.bf16.gmra.mxu0 %v424
    %v522 = vpop.f32.mrf.mxu0
    %v523 = vadd.f32 0.0, %v522
    %v524 = vpop.f32.mrf.mxu0
    %v525 = vpop.f32.mrf.mxu0
    %v526 = vadd.f32 0.0, %v525
    %v527 = vpop.f32.mrf.mxu0
    %528 = vmatprep.mubr.bf16.mxu0 0
    %529 = vmatmul.mubr.bf16.gmra.mxu0 %v425
    %v530 = vpop.f32.mrf.mxu0
    %v531 = vadd.f32 0.0, %v530
    %v532 = vpop.f32.mrf.mxu0
    %v533 = vpop.f32.mrf.mxu0
    %v534 = vadd.f32 0.0, %v533
    %v535 = vpop.f32.mrf.mxu0
    %536 = vmatprep.mubr.bf16.mxu0 0
    %537 = vmatmul.mubr.bf16.gmra.mxu0 %v426
    %v538 = vpop.f32.mrf.mxu0
    %v539 = vadd.f32 0.0, %v538
    %v540 = vpop.f32.mrf.mxu0
    %v541 = vpop.f32.mrf.mxu0
    %v542 = vadd.f32 0.0, %v541
    %v543 = vpop.f32.mrf.mxu0
    %544 = vmatprep.mubr.bf16.mxu0 0
    %545 = vmatmul.mubr.bf16.gmra.mxu0 %v427
    %v546 = vpop.f32.mrf.mxu0
    %v547 = vadd.f32 0.0, %v546
    %v548 = vpop.f32.mrf.mxu0
    %v549 = vpop.f32.mrf.mxu0
    %v550 = vadd.f32 0.0, %v549
    %v551 = vpop.f32.mrf.mxu0
    %552 = vmatprep.mubr.bf16.mxu0 0
    %553 = vmatmul.mubr.bf16.gmra.mxu0 %v428
    %v554 = vpop.f32.mrf.mxu0
    %v555 = vadd.f32 0.0, %v554
    %v556 = vpop.f32.mrf.mxu0
    %v557 = vpop.f32.mrf.mxu0
    %v558 = vadd.f32 0.0, %v557
    %v559 = vpop.f32.mrf.mxu0
    %560 = vmatprep.mubr.bf16.mxu0 0
    %561 = vmatmul.mubr.bf16.gmra.mxu0 %v429
    %v562 = vpop.f32.mrf.mxu0
    %v563 = vadd.f32 0.0, %v562
    %v564 = vpop.f32.mrf.mxu0
    %v565 = vpop.f32.mrf.mxu0
    %v566 = vadd.f32 0.0, %v565
    %v567 = vpop.f32.mrf.mxu0
    %568 = vmatprep.mubr.bf16.mxu0 0
    %569 = vmatmul.mubr.bf16.gmra.mxu0 %v430
    %v570 = vpop.f32.mrf.mxu0
    %v571 = vadd.f32 0.0, %v570
    %v572 = vpop.f32.mrf.mxu0
    %v573 = vpop.f32.mrf.mxu0
    %v574 = vadd.f32 0.0, %v573
    %v575 = vpop.f32.mrf.mxu0
    %576 = vmatprep.mubr.bf16.mxu0 0
    %577 = vmatmul.mubr.bf16.gmra.mxu0 %v431
    %v578 = vpop.f32.mrf.mxu0
    %v579 = vadd.f32 0.0, %v578
    %v580 = vpop.f32.mrf.mxu0
    %v581 = vpop.f32.mrf.mxu0
    %v582 = vadd.f32 0.0, %v581
    %v583 = vpop.f32.mrf.mxu0
    %584 = vdwg.mxu0
    %v601 = vunpack.c.l.b16 %v344
    %v602 = vunpack.c.l.b16 %v345
    %v603 = vunpack.c.l.b16 %v346
    %v604 = vunpack.c.l.b16 %v347
    %v605 = vunpack.c.l.b16 %v348
    %v606 = vunpack.c.l.b16 %v349
    %v607 = vunpack.c.l.b16 %v350
    %v608 = vunpack.c.l.b16 %v351
    %v609 = vunpack.c.l.b16 %v352
    %v610 = vunpack.c.l.b16 %v353
    %v611 = vunpack.c.l.b16 %v354
    %v612 = vunpack.c.l.b16 %v355
    %v613 = vunpack.c.l.b16 %v356
    %v614 = vunpack.c.l.b16 %v357
    %v615 = vunpack.c.l.b16 %v358
    %v616 = vunpack.c.l.b16 %v359
    %v617 = vpack.c.b16 %v602, %v601
    %v618 = vpack.c.b16 %v604, %v603
    %v619 = vpack.c.b16 %v606, %v605
    %v620 = vpack.c.b16 %v608, %v607
    %v621 = vpack.c.b16 %v610, %v609
    %v622 = vpack.c.b16 %v612, %v611
    %v623 = vpack.c.b16 %v614, %v613
    %v624 = vpack.c.b16 %v616, %v615
    %633 = vmatprep.subr.bf16.mxu0 0
    %634 = vmatpush1.bf16.msra.mxu0 %v624
    %635 = vmatprep.subr.bf16.mxu0 0
    %636 = vmatpush1.bf16.msra.mxu0 %v623
    %637 = vmatprep.subr.bf16.mxu0 0
    %638 = vmatpush1.bf16.msra.mxu0 %v622
    %639 = vmatprep.subr.bf16.mxu0 0
    %640 = vmatpush1.bf16.msra.mxu0 %v621
    %641 = vmatprep.subr.bf16.mxu0 0
    %642 = vmatpush1.bf16.msra.mxu0 %v620
    %643 = vmatprep.subr.bf16.mxu0 0
    %644 = vmatpush1.bf16.msra.mxu0 %v619
    %645 = vmatprep.subr.bf16.mxu0 0
    %646 = vmatpush1.bf16.msra.mxu0 %v618
    %647 = vmatprep.subr.bf16.mxu0 0
    %648 = vmatpush1.bf16.msra.mxu0 %v617
    %649 = vmatprep.subr.bf16.mxu0 0
    %650 = vmatpush2.bf16.msra.mxu0 0
    %651 = vmatprep.subr.bf16.mxu0 0
    %652 = vmatpush2.bf16.msra.mxu0 0
    %653 = vmatprep.subr.bf16.mxu0 0
    %654 = vmatpush2.bf16.msra.mxu0 0
    %655 = vmatprep.subr.bf16.mxu0 0
    %656 = vmatpush2.bf16.msra.mxu0 0
    %657 = vmatprep.subr.bf16.mxu0 0
    %658 = vmatpush2.bf16.msra.mxu0 0
    %659 = vmatprep.subr.bf16.mxu0 0
    %660 = vmatpush2.bf16.msra.mxu0 0
    %661 = vmatprep.subr.bf16.mxu0 0
    %662 = vmatpush2.bf16.msra.mxu0 0
    %663 = vmatprep.subr.bf16.mxu0 0
    %664 = vmatpush2.bf16.msra.mxu0 0
    %665 = vmatprep.mubr.bf16.mxu0 0
    %666 = vmatmul.mubr.bf16.gmra.mxu0 %v336
    %v667 = vpop.f32.mrf.mxu0
    %v668 = vadd.f32 %v523, %v667
    %v669 = vpop.f32.mrf.mxu0
    %v670 = vpop.f32.mrf.mxu0
    %v671 = vadd.f32 %v526, %v670
    %v672 = vpop.f32.mrf.mxu0
    %673 = vmatprep.mubr.bf16.mxu0 0
    %674 = vmatmul.mubr.bf16.gmra.mxu0 %v337
    %v675 = vpop.f32.mrf.mxu0
    %v676 = vadd.f32 %v531, %v675
    %v677 = vpop.f32.mrf.mxu0
    %v678 = vpop.f32.mrf.mxu0
    %v679 = vadd.f32 %v534, %v678
    %v680 = vpop.f32.mrf.mxu0
    %681 = vmatprep.mubr.bf16.mxu0 0
    %682 = vmatmul.mubr.bf16.gmra.mxu0 %v338
    %v683 = vpop.f32.mrf.mxu0
    %v684 = vadd.f32 %v539, %v683
    %v685 = vpop.f32.mrf.mxu0
    %v686 = vpop.f32.mrf.mxu0
    %v687 = vadd.f32 %v542, %v686
    %v688 = vpop.f32.mrf.mxu0
    %689 = vmatprep.mubr.bf16.mxu0 0
    %690 = vmatmul.mubr.bf16.gmra.mxu0 %v339
    %v691 = vpop.f32.mrf.mxu0
    %v692 = vadd.f32 %v547, %v691
    %v693 = vpop.f32.mrf.mxu0
    %v694 = vpop.f32.mrf.mxu0
    %v695 = vadd.f32 %v550, %v694
    %v696 = vpop.f32.mrf.mxu0
    %697 = vmatprep.mubr.bf16.mxu0 0
    %698 = vmatmul.mubr.bf16.gmra.mxu0 %v340
    %v699 = vpop.f32.mrf.mxu0
    %v700 = vadd.f32 %v555, %v699
    %v701 = vpop.f32.mrf.mxu0
    %v702 = vpop.f32.mrf.mxu0
    %v703 = vadd.f32 %v558, %v702
    %v704 = vpop.f32.mrf.mxu0
    %705 = vmatprep.mubr.bf16.mxu0 0
    %706 = vmatmul.mubr.bf16.gmra.mxu0 %v341
    %v707 = vpop.f32.mrf.mxu0
    %v708 = vadd.f32 %v563, %v707
    %v709 = vpop.f32.mrf.mxu0
    %v710 = vpop.f32.mrf.mxu0
    %v711 = vadd.f32 %v566, %v710
    %v712 = vpop.f32.mrf.mxu0
    %713 = vmatprep.mubr.bf16.mxu0 0
    %714 = vmatmul.mubr.bf16.gmra.mxu0 %v342
    %v715 = vpop.f32.mrf.mxu0
    %v716 = vadd.f32 %v571, %v715
    %v717 = vpop.f32.mrf.mxu0
    %v718 = vpop.f32.mrf.mxu0
    %v719 = vadd.f32 %v574, %v718
    %v720 = vpop.f32.mrf.mxu0
    %721 = vmatprep.mubr.bf16.mxu0 0
    %722 = vmatmul.mubr.bf16.gmra.mxu0 %v343
    %v723 = vpop.f32.mrf.mxu0
    %v724 = vadd.f32 %v579, %v723
    %v725 = vpop.f32.mrf.mxu0
    %v726 = vpop.f32.mrf.mxu0
    %v727 = vadd.f32 %v582, %v726
    %v728 = vpop.f32.mrf.mxu0
    %729 = vdwg.mxu0
    %v730 = vld [vmem:[%s5] sm:$0x1]
    %v732 = vlaneseq
    %v733 = vshrl.u32 %v732, 7
    %v734 = vsub.s32 0, %v733
    %v735 = vrot.slane %v730, %v734
    %v737 = vadd.f32 %v668, %v735
    %v738 = vadd.f32 %v671, %v735
    %v739 = vadd.f32 %v676, %v735
    %v740 = vadd.f32 %v679, %v735
    %v741 = vadd.f32 %v684, %v735
    %v742 = vadd.f32 %v687, %v735
    %v743 = vadd.f32 %v692, %v735
    %v744 = vadd.f32 %v695, %v735
    %v745 = vadd.f32 %v700, %v735
    %v746 = vadd.f32 %v703, %v735
    %v747 = vadd.f32 %v708, %v735
    %v748 = vadd.f32 %v711, %v735
    %v749 = vadd.f32 %v716, %v735
    %v750 = vadd.f32 %v719, %v735
    %v751 = vadd.f32 %v724, %v735
    %v752 = vadd.f32 %v727, %v735
    %v753 = vmax.f32 %v737, 0.0
    %v754 = vmax.f32 %v738, 0.0
    %v755 = vmax.f32 %v739, 0.0
    %v756 = vmax.f32 %v740, 0.0
    %v757 = vmax.f32 %v741, 0.0
    %v758 = vmax.f32 %v742, 0.0
    %v759 = vmax.f32 %v743, 0.0
    %v760 = vmax.f32 %v744, 0.0
    %v761 = vmax.f32 %v745, 0.0
    %v762 = vmax.f32 %v746, 0.0
    %v763 = vmax.f32 %v747, 0.0
    %v764 = vmax.f32 %v748, 0.0
    %v765 = vmax.f32 %v749, 0.0
    %v766 = vmax.f32 %v750, 0.0
    %v767 = vmax.f32 %v751, 0.0
    %v768 = vmax.f32 %v752, 0.0
    %v769 = vpack.c.bf16 %v754, %v753
    %v770 = vpack.c.bf16 %v756, %v755
    %v771 = vpack.c.bf16 %v758, %v757
    %v772 = vpack.c.bf16 %v760, %v759
    %v773 = vpack.c.bf16 %v762, %v761
    %v774 = vpack.c.bf16 %v764, %v763
    %v775 = vpack.c.bf16 %v766, %v765
    %v776 = vpack.c.bf16 %v768, %v767
    %v785 = vunpack.c.l.b16 %v769
    %v786 = vunpack.c.h.b16 %v769
    %v787 = vunpack.c.l.b16 %v770
    %v788 = vunpack.c.h.b16 %v770
    %v789 = vunpack.c.l.b16 %v771
    %v790 = vunpack.c.h.b16 %v771
    %v791 = vunpack.c.l.b16 %v772
    %v792 = vunpack.c.h.b16 %v772
    %v793 = vunpack.c.l.b16 %v773
    %v794 = vunpack.c.h.b16 %v773
    %v795 = vunpack.c.l.b16 %v774
    %v796 = vunpack.c.h.b16 %v774
    %v797 = vunpack.c.l.b16 %v775
    %v798 = vunpack.c.h.b16 %v775
    %v799 = vunpack.c.l.b16 %v776
    %v800 = vunpack.c.h.b16 %v776
    %v801 = vpack.c.b16 %v785, %v785
    %v802 = vpack.c.b16 %v786, %v786
    %v803 = vpack.c.b16 %v787, %v787
    %v804 = vpack.c.b16 %v788, %v788
    %v805 = vpack.c.b16 %v789, %v789
    %v806 = vpack.c.b16 %v790, %v790
    %v807 = vpack.c.b16 %v791, %v791
    %v808 = vpack.c.b16 %v792, %v792
    %v809 = vpack.c.b16 %v793, %v793
    %v810 = vpack.c.b16 %v794, %v794
    %v811 = vpack.c.b16 %v795, %v795
    %v812 = vpack.c.b16 %v796, %v796
    %v813 = vpack.c.b16 %v797, %v797
    %v814 = vpack.c.b16 %v798, %v798
    %v815 = vpack.c.b16 %v799, %v799
    %v816 = vpack.c.b16 %v800, %v800
    %833 = vst [vmem:[%s6] sm:$0xf] %v801
    %834 = vst [vmem:[%s6 + $0x4] sm:$0xf] %v802
    %835 = vst [vmem:[%s6 + $0x8] sm:$0xf] %v803
    %836 = vst [vmem:[%s6 + $0xc] sm:$0xf] %v804
    %837 = vst [vmem:[%s6 + $0x10] sm:$0xf] %v805
    %838 = vst [vmem:[%s6 + $0x14] sm:$0xf] %v806
    %839 = vst [vmem:[%s6 + $0x18] sm:$0xf] %v807
    %840 = vst [vmem:[%s6 + $0x1c] sm:$0xf] %v808
    %841 = vst [vmem:[%s6 + $0x20] sm:$0xf] %v809
    %842 = vst [vmem:[%s6 + $0x24] sm:$0xf] %v810
    %843 = vst [vmem:[%s6 + $0x28] sm:$0xf] %v811
    %844 = vst [vmem:[%s6 + $0x2c] sm:$0xf] %v812
    %845 = vst [vmem:[%s6 + $0x30] sm:$0xf] %v813
    %846 = vst [vmem:[%s6 + $0x34] sm:$0xf] %v814
    %847 = vst [vmem:[%s6 + $0x38] sm:$0xf] %v815
    %848 = vst [vmem:[%s6 + $0x3c] sm:$0xf] %v816
  $region33: #{cluster_gcn_forward.3} parent=0 // pred_fallthru
    _
  // Predicated region
  $region34: #{cluster_gcn_forward.3} parent=0 // pred_check
    _
  $region35: #{cluster_gcn_forward.3} parent=0 // pred_check_branch
    %850 = sbr.rel (0) target = $region37
  $region36: #{cluster_gcn_forward.3} parent=0 // pred_region
    _
  $region37: #{cluster_gcn_forward.3} parent=0 // pred_fallthru
    _
  // Predicated region
  $region38: #{cluster_gcn_forward.3} parent=0 // pred_check
    _
  $region39: #{cluster_gcn_forward.3} parent=0 // pred_check_branch
    %852 = sbr.rel (0) target = $region41
  $region40: #{cluster_gcn_forward.3} parent=0 // pred_region
    _
  $region41: #{cluster_gcn_forward.3} parent=0 // pred_fallthru
    _

// kernel: cluster_gcn_forward.5
$region0: #{cluster_gcn_forward.5}
  #allocation0 [shape = 'u32[]', space=smem, size = 0x4, offset = 0x4, fixed_abs, tag = 'smem constant byte address 0x4 - core index']
  #allocation1 [shape = 'u32[144,128]{1,0:T(1,128)}', space=vmem, size = 0x12000, scoped, tag = 'internal scratch']
  #allocation2 [shape = 'f32[128,128]{1,0:T(8,128)}', space=vmem, size = 0x10000, scoped, tag = 'scratch operand']
  %s0 = inlined_call_operand.vmem [shape: bf16[128,128], index: 0, kind: input, shape index: {}]
  %s1 = inlined_call_operand.vmem [shape: bf16[128,128], index: 1, kind: input, shape index: {}, may-alias: {1,2}]
  %s2 = inlined_call_operand.vmem [shape: bf16[128,128], index: 2, kind: input, shape index: {}, may-alias: {1,2}]
  %s3 = inlined_call_operand.vmem [shape: bf16[128,128], index: 3, kind: input, shape index: {}]
  %s4 = inlined_call_operand.vmem [shape: bf16[128,128], index: 4, kind: input, shape index: {}]
  %s5 = inlined_call_operand.vmem [shape: f32[1,128], index: 5, kind: input, shape index: {}]
  %s6 = inlined_call_operand.vmem [shape: f32[128,128], index: 6, kind: output, shape index: {}]
  %s7 = sld [smem:[#allocation0]]
  $region42: #{cluster_gcn_forward.5} parent=0
    _
  %s9 = ssub.s32 1, %s7
  %s10 = scalar_select 0, %s9, %s7
  // Predicated region
  $region2: #{cluster_gcn_forward.5} parent=0 // pred_check
    _
  $region3: #{cluster_gcn_forward.5} parent=0 // pred_check_branch
    %12 = sbr.rel (0) target = $region5
  $region4: #{cluster_gcn_forward.5} parent=0 // pred_region
    _
  $region5: #{cluster_gcn_forward.5} parent=0 // pred_fallthru
    _
  // Predicated region
  $region6: #{cluster_gcn_forward.5} parent=0 // pred_check
    _
  $region7: #{cluster_gcn_forward.5} parent=0 // pred_check_branch
    %14 = sbr.rel (0) target = $region9
  $region8: #{cluster_gcn_forward.5} parent=0 // pred_region
    _
  $region9: #{cluster_gcn_forward.5} parent=0 // pred_fallthru
    _
  // Predicated region
  $region10: #{cluster_gcn_forward.5} parent=0 // pred_check
    _
  $region11: #{cluster_gcn_forward.5} parent=0 // pred_check_branch
    %16 = sbr.rel (0) target = $region13
  $region12: #{cluster_gcn_forward.5} parent=0 // pred_region
    _
  $region13: #{cluster_gcn_forward.5} parent=0 // pred_fallthru
    _
  // Predicated region
  $region14: #{cluster_gcn_forward.5} parent=0 // pred_check
    _
  $region15: #{cluster_gcn_forward.5} parent=0 // pred_check_branch
    %18 = sbr.rel (0) target = $region17
  $region16: #{cluster_gcn_forward.5} parent=0 // pred_region
    _
  $region17: #{cluster_gcn_forward.5} parent=0 // pred_fallthru
    _
  // Predicated region
  $region18: #{cluster_gcn_forward.5} parent=0 // pred_check
    _
  $region19: #{cluster_gcn_forward.5} parent=0 // pred_check_branch
    %20 = sbr.rel (0) target = $region21
  $region20: #{cluster_gcn_forward.5} parent=0 // pred_region
    _
  $region21: #{cluster_gcn_forward.5} parent=0 // pred_fallthru
    _
  // Predicated region
  $region22: #{cluster_gcn_forward.5} parent=0 // pred_check
    _
  $region23: #{cluster_gcn_forward.5} parent=0 // pred_check_branch
    %22 = sbr.rel (0) target = $region25
  $region24: #{cluster_gcn_forward.5} parent=0 // pred_region
    _
  $region25: #{cluster_gcn_forward.5} parent=0 // pred_fallthru
    _
  %p24 = scmp.eq.s32.totalorder 0, 0
  // Predicated region
  $region26: #{cluster_gcn_forward.5} parent=0 // pred_check
    %p25 = pneg %p24
  $region27: #{cluster_gcn_forward.5} parent=0 // pred_check_branch
    %27 = sbr.rel (%p25) target = $region29
  $region28: #{cluster_gcn_forward.5} parent=0 // pred_region
    %28 = vst [vmem:[#allocation2] sm:$0xff] 0.0
    %29 = vst [vmem:[#allocation2 + $0x8] sm:$0xff] 0.0
    %30 = vst [vmem:[#allocation2 + $0x10] sm:$0xff] 0.0
    %31 = vst [vmem:[#allocation2 + $0x18] sm:$0xff] 0.0
    %32 = vst [vmem:[#allocation2 + $0x20] sm:$0xff] 0.0
    %33 = vst [vmem:[#allocation2 + $0x28] sm:$0xff] 0.0
    %34 = vst [vmem:[#allocation2 + $0x30] sm:$0xff] 0.0
    %35 = vst [vmem:[#allocation2 + $0x38] sm:$0xff] 0.0
    %36 = vst [vmem:[#allocation2 + $0x40] sm:$0xff] 0.0
    %37 = vst [vmem:[#allocation2 + $0x48] sm:$0xff] 0.0
    %38 = vst [vmem:[#allocation2 + $0x50] sm:$0xff] 0.0
    %39 = vst [vmem:[#allocation2 + $0x58] sm:$0xff] 0.0
    %40 = vst [vmem:[#allocation2 + $0x60] sm:$0xff] 0.0
    %41 = vst [vmem:[#allocation2 + $0x68] sm:$0xff] 0.0
    %42 = vst [vmem:[#allocation2 + $0x70] sm:$0xff] 0.0
    %43 = vst [vmem:[#allocation2 + $0x78] sm:$0xff] 0.0
  $region29: #{cluster_gcn_forward.5} parent=0 // pred_fallthru
    _
  %v44 = vld [vmem:[#allocation2] sm:$0xff]
  %v45 = vld [vmem:[#allocation2 + $0x8] sm:$0xff]
  %v46 = vld [vmem:[#allocation2 + $0x10] sm:$0xff]
  %v47 = vld [vmem:[#allocation2 + $0x18] sm:$0xff]
  %v48 = vld [vmem:[#allocation2 + $0x20] sm:$0xff]
  %v49 = vld [vmem:[#allocation2 + $0x28] sm:$0xff]
  %v50 = vld [vmem:[#allocation2 + $0x30] sm:$0xff]
  %v51 = vld [vmem:[#allocation2 + $0x38] sm:$0xff]
  %v52 = vld [vmem:[#allocation2 + $0x40] sm:$0xff]
  %v53 = vld [vmem:[#allocation2 + $0x48] sm:$0xff]
  %v54 = vld [vmem:[#allocation2 + $0x50] sm:$0xff]
  %v55 = vld [vmem:[#allocation2 + $0x58] sm:$0xff]
  %v56 = vld [vmem:[#allocation2 + $0x60] sm:$0xff]
  %v57 = vld [vmem:[#allocation2 + $0x68] sm:$0xff]
  %v58 = vld [vmem:[#allocation2 + $0x70] sm:$0xff]
  %v59 = vld [vmem:[#allocation2 + $0x78] sm:$0xff]
  %v60 = vld [vmem:[%s0] sm:$0xf]
  %v61 = vld [vmem:[%s0 + $0x4] sm:$0xf]
  %v62 = vld [vmem:[%s0 + $0x8] sm:$0xf]
  %v63 = vld [vmem:[%s0 + $0xc] sm:$0xf]
  %v64 = vld [vmem:[%s0 + $0x10] sm:$0xf]
  %v65 = vld [vmem:[%s0 + $0x14] sm:$0xf]
  %v66 = vld [vmem:[%s0 + $0x18] sm:$0xf]
  %v67 = vld [vmem:[%s0 + $0x1c] sm:$0xf]
  %v68 = vld [vmem:[%s0 + $0x20] sm:$0xf]
  %v69 = vld [vmem:[%s0 + $0x24] sm:$0xf]
  %v70 = vld [vmem:[%s0 + $0x28] sm:$0xf]
  %v71 = vld [vmem:[%s0 + $0x2c] sm:$0xf]
  %v72 = vld [vmem:[%s0 + $0x30] sm:$0xf]
  %v73 = vld [vmem:[%s0 + $0x34] sm:$0xf]
  %v74 = vld [vmem:[%s0 + $0x38] sm:$0xf]
  %v75 = vld [vmem:[%s0 + $0x3c] sm:$0xf]
  %v76 = vld [vmem:[%s1] sm:$0xf]
  %v77 = vld [vmem:[%s1 + $0x4] sm:$0xf]
  %v78 = vld [vmem:[%s1 + $0x8] sm:$0xf]
  %v79 = vld [vmem:[%s1 + $0xc] sm:$0xf]
  %v80 = vld [vmem:[%s1 + $0x10] sm:$0xf]
  %v81 = vld [vmem:[%s1 + $0x14] sm:$0xf]
  %v82 = vld [vmem:[%s1 + $0x18] sm:$0xf]
  %v83 = vld [vmem:[%s1 + $0x1c] sm:$0xf]
  %v84 = vld [vmem:[%s1 + $0x20] sm:$0xf]
  %v85 = vld [vmem:[%s1 + $0x24] sm:$0xf]
  %v86 = vld [vmem:[%s1 + $0x28] sm:$0xf]
  %v87 = vld [vmem:[%s1 + $0x2c] sm:$0xf]
  %v88 = vld [vmem:[%s1 + $0x30] sm:$0xf]
  %v89 = vld [vmem:[%s1 + $0x34] sm:$0xf]
  %v90 = vld [vmem:[%s1 + $0x38] sm:$0xf]
  %v91 = vld [vmem:[%s1 + $0x3c] sm:$0xf]
  %v108 = vunpack.c.l.b16 %v60
  %v109 = vunpack.c.l.b16 %v61
  %v110 = vunpack.c.l.b16 %v62
  %v111 = vunpack.c.l.b16 %v63
  %v112 = vunpack.c.l.b16 %v64
  %v113 = vunpack.c.l.b16 %v65
  %v114 = vunpack.c.l.b16 %v66
  %v115 = vunpack.c.l.b16 %v67
  %v116 = vunpack.c.l.b16 %v68
  %v117 = vunpack.c.l.b16 %v69
  %v118 = vunpack.c.l.b16 %v70
  %v119 = vunpack.c.l.b16 %v71
  %v120 = vunpack.c.l.b16 %v72
  %v121 = vunpack.c.l.b16 %v73
  %v122 = vunpack.c.l.b16 %v74
  %v123 = vunpack.c.l.b16 %v75
  %v124 = vpack.c.b16 %v109, %v108
  %v125 = vpack.c.b16 %v111, %v110
  %v126 = vpack.c.b16 %v113, %v112
  %v127 = vpack.c.b16 %v115, %v114
  %v128 = vpack.c.b16 %v117, %v116
  %v129 = vpack.c.b16 %v119, %v118
  %v130 = vpack.c.b16 %v121, %v120
  %v131 = vpack.c.b16 %v123, %v122
  %v156 = vunpack.c.l.b16 %v76
  %v157 = vunpack.c.l.b16 %v77
  %v158 = vunpack.c.l.b16 %v78
  %v159 = vunpack.c.l.b16 %v79
  %v160 = vunpack.c.l.b16 %v80
  %v161 = vunpack.c.l.b16 %v81
  %v162 = vunpack.c.l.b16 %v82
  %v163 = vunpack.c.l.b16 %v83
  %v164 = vunpack.c.l.b16 %v84
  %v165 = vunpack.c.l.b16 %v85
  %v166 = vunpack.c.l.b16 %v86
  %v167 = vunpack.c.l.b16 %v87
  %v168 = vunpack.c.l.b16 %v88
  %v169 = vunpack.c.l.b16 %v89
  %v170 = vunpack.c.l.b16 %v90
  %v171 = vunpack.c.l.b16 %v91
  %v172 = vpack.c.b16 %v157, %v156
  %v173 = vpack.c.b16 %v159, %v158
  %v174 = vpack.c.b16 %v161, %v160
  %v175 = vpack.c.b16 %v163, %v162
  %v176 = vpack.c.b16 %v165, %v164
  %v177 = vpack.c.b16 %v167, %v166
  %v178 = vpack.c.b16 %v169, %v168
  %v179 = vpack.c.b16 %v171, %v170
  %188 = vmatprep.subr.bf16.mxu0 0
  %189 = vmatpush1.bf16.msra.mxu0 %v179
  %190 = vmatprep.subr.bf16.mxu0 0
  %191 = vmatpush1.bf16.msra.mxu0 %v178
  %192 = vmatprep.subr.bf16.mxu0 0
  %193 = vmatpush1.bf16.msra.mxu0 %v177
  %194 = vmatprep.subr.bf16.mxu0 0
  %195 = vmatpush1.bf16.msra.mxu0 %v176
  %196 = vmatprep.subr.bf16.mxu0 0
  %197 = vmatpush1.bf16.msra.mxu0 %v175
  %198 = vmatprep.subr.bf16.mxu0 0
  %199 = vmatpush1.bf16.msra.mxu0 %v174
  %200 = vmatprep.subr.bf16.mxu0 0
  %201 = vmatpush1.bf16.msra.mxu0 %v173
  %202 = vmatprep.subr.bf16.mxu0 0
  %203 = vmatpush1.bf16.msra.mxu0 %v172
  %204 = vmatprep.subr.bf16.mxu0 0
  %205 = vmatpush2.bf16.msra.mxu0 0
  %206 = vmatprep.subr.bf16.mxu0 0
  %207 = vmatpush2.bf16.msra.mxu0 0
  %208 = vmatprep.subr.bf16.mxu0 0
  %209 = vmatpush2.bf16.msra.mxu0 0
  %210 = vmatprep.subr.bf16.mxu0 0
  %211 = vmatpush2.bf16.msra.mxu0 0
  %212 = vmatprep.subr.bf16.mxu0 0
  %213 = vmatpush2.bf16.msra.mxu0 0
  %214 = vmatprep.subr.bf16.mxu0 0
  %215 = vmatpush2.bf16.msra.mxu0 0
  %216 = vmatprep.subr.bf16.mxu0 0
  %217 = vmatpush2.bf16.msra.mxu0 0
  %218 = vmatprep.subr.bf16.mxu0 0
  %219 = vmatpush2.bf16.msra.mxu0 0
  %220 = vmatprep.mubr.bf16.mxu0 0
  %221 = vmatmul.mubr.bf16.gmra.mxu0 %v124
  %v222 = vpop.f32.mrf.mxu0
  %v223 = vadd.f32 0.0, %v222
  %v224 = vpop.f32.mrf.mxu0
  %v225 = vpop.f32.mrf.mxu0
  %v226 = vadd.f32 0.0, %v225
  %v227 = vpop.f32.mrf.mxu0
  %228 = vmatprep.mubr.bf16.mxu0 0
  %229 = vmatmul.mubr.bf16.gmra.mxu0 %v125
  %v230 = vpop.f32.mrf.mxu0
  %v231 = vadd.f32 0.0, %v230
  %v232 = vpop.f32.mrf.mxu0
  %v233 = vpop.f32.mrf.mxu0
  %v234 = vadd.f32 0.0, %v233
  %v235 = vpop.f32.mrf.mxu0
  %236 = vmatprep.mubr.bf16.mxu0 0
  %237 = vmatmul.mubr.bf16.gmra.mxu0 %v126
  %v238 = vpop.f32.mrf.mxu0
  %v239 = vadd.f32 0.0, %v238
  %v240 = vpop.f32.mrf.mxu0
  %v241 = vpop.f32.mrf.mxu0
  %v242 = vadd.f32 0.0, %v241
  %v243 = vpop.f32.mrf.mxu0
  %244 = vmatprep.mubr.bf16.mxu0 0
  %245 = vmatmul.mubr.bf16.gmra.mxu0 %v127
  %v246 = vpop.f32.mrf.mxu0
  %v247 = vadd.f32 0.0, %v246
  %v248 = vpop.f32.mrf.mxu0
  %v249 = vpop.f32.mrf.mxu0
  %v250 = vadd.f32 0.0, %v249
  %v251 = vpop.f32.mrf.mxu0
  %252 = vmatprep.mubr.bf16.mxu0 0
  %253 = vmatmul.mubr.bf16.gmra.mxu0 %v128
  %v254 = vpop.f32.mrf.mxu0
  %v255 = vadd.f32 0.0, %v254
  %v256 = vpop.f32.mrf.mxu0
  %v257 = vpop.f32.mrf.mxu0
  %v258 = vadd.f32 0.0, %v257
  %v259 = vpop.f32.mrf.mxu0
  %260 = vmatprep.mubr.bf16.mxu0 0
  %261 = vmatmul.mubr.bf16.gmra.mxu0 %v129
  %v262 = vpop.f32.mrf.mxu0
  %v263 = vadd.f32 0.0, %v262
  %v264 = vpop.f32.mrf.mxu0
  %v265 = vpop.f32.mrf.mxu0
  %v266 = vadd.f32 0.0, %v265
  %v267 = vpop.f32.mrf.mxu0
  %268 = vmatprep.mubr.bf16.mxu0 0
  %269 = vmatmul.mubr.bf16.gmra.mxu0 %v130
  %v270 = vpop.f32.mrf.mxu0
  %v271 = vadd.f32 0.0, %v270
  %v272 = vpop.f32.mrf.mxu0
  %v273 = vpop.f32.mrf.mxu0
  %v274 = vadd.f32 0.0, %v273
  %v275 = vpop.f32.mrf.mxu0
  %276 = vmatprep.mubr.bf16.mxu0 0
  %277 = vmatmul.mubr.bf16.gmra.mxu0 %v131
  %v278 = vpop.f32.mrf.mxu0
  %v279 = vadd.f32 0.0, %v278
  %v280 = vpop.f32.mrf.mxu0
  %v281 = vpop.f32.mrf.mxu0
  %v282 = vadd.f32 0.0, %v281
  %v283 = vpop.f32.mrf.mxu0
  %284 = vdwg.mxu0
  %v285 = vadd.f32 %v44, %v223
  %v286 = vadd.f32 %v45, %v226
  %v287 = vadd.f32 %v46, %v231
  %v288 = vadd.f32 %v47, %v234
  %v289 = vadd.f32 %v48, %v239
  %v290 = vadd.f32 %v49, %v242
  %v291 = vadd.f32 %v50, %v247
  %v292 = vadd.f32 %v51, %v250
  %v293 = vadd.f32 %v52, %v255
  %v294 = vadd.f32 %v53, %v258
  %v295 = vadd.f32 %v54, %v263
  %v296 = vadd.f32 %v55, %v266
  %v297 = vadd.f32 %v56, %v271
  %v298 = vadd.f32 %v57, %v274
  %v299 = vadd.f32 %v58, %v279
  %v300 = vadd.f32 %v59, %v282
  %301 = vst [vmem:[#allocation2] sm:$0xff] %v285
  %302 = vst [vmem:[#allocation2 + $0x8] sm:$0xff] %v286
  %303 = vst [vmem:[#allocation2 + $0x10] sm:$0xff] %v287
  %304 = vst [vmem:[#allocation2 + $0x18] sm:$0xff] %v288
  %305 = vst [vmem:[#allocation2 + $0x20] sm:$0xff] %v289
  %306 = vst [vmem:[#allocation2 + $0x28] sm:$0xff] %v290
  %307 = vst [vmem:[#allocation2 + $0x30] sm:$0xff] %v291
  %308 = vst [vmem:[#allocation2 + $0x38] sm:$0xff] %v292
  %309 = vst [vmem:[#allocation2 + $0x40] sm:$0xff] %v293
  %310 = vst [vmem:[#allocation2 + $0x48] sm:$0xff] %v294
  %311 = vst [vmem:[#allocation2 + $0x50] sm:$0xff] %v295
  %312 = vst [vmem:[#allocation2 + $0x58] sm:$0xff] %v296
  %313 = vst [vmem:[#allocation2 + $0x60] sm:$0xff] %v297
  %314 = vst [vmem:[#allocation2 + $0x68] sm:$0xff] %v298
  %315 = vst [vmem:[#allocation2 + $0x70] sm:$0xff] %v299
  %316 = vst [vmem:[#allocation2 + $0x78] sm:$0xff] %v300
  // Predicated region
  $region30: #{cluster_gcn_forward.5} parent=0 // pred_check
    %p317 = pneg %p24
  $region31: #{cluster_gcn_forward.5} parent=0 // pred_check_branch
    %319 = sbr.rel (%p317) target = $region33
  $region32: #{cluster_gcn_forward.5} parent=0 // pred_region
    %v320 = vld [vmem:[#allocation2] sm:$0xff]
    %v321 = vld [vmem:[#allocation2 + $0x8] sm:$0xff]
    %v322 = vld [vmem:[#allocation2 + $0x10] sm:$0xff]
    %v323 = vld [vmem:[#allocation2 + $0x18] sm:$0xff]
    %v324 = vld [vmem:[#allocation2 + $0x20] sm:$0xff]
    %v325 = vld [vmem:[#allocation2 + $0x28] sm:$0xff]
    %v326 = vld [vmem:[#allocation2 + $0x30] sm:$0xff]
    %v327 = vld [vmem:[#allocation2 + $0x38] sm:$0xff]
    %v328 = vld [vmem:[#allocation2 + $0x40] sm:$0xff]
    %v329 = vld [vmem:[#allocation2 + $0x48] sm:$0xff]
    %v330 = vld [vmem:[#allocation2 + $0x50] sm:$0xff]
    %v331 = vld [vmem:[#allocation2 + $0x58] sm:$0xff]
    %v332 = vld [vmem:[#allocation2 + $0x60] sm:$0xff]
    %v333 = vld [vmem:[#allocation2 + $0x68] sm:$0xff]
    %v334 = vld [vmem:[#allocation2 + $0x70] sm:$0xff]
    %v335 = vld [vmem:[#allocation2 + $0x78] sm:$0xff]
    %v336 = vpack.c.bf16 %v321, %v320
    %v337 = vpack.c.bf16 %v323, %v322
    %v338 = vpack.c.bf16 %v325, %v324
    %v339 = vpack.c.bf16 %v327, %v326
    %v340 = vpack.c.bf16 %v329, %v328
    %v341 = vpack.c.bf16 %v331, %v330
    %v342 = vpack.c.bf16 %v333, %v332
    %v343 = vpack.c.bf16 %v335, %v334
    %v344 = vld [vmem:[%s3] sm:$0xf]
    %v345 = vld [vmem:[%s3 + $0x4] sm:$0xf]
    %v346 = vld [vmem:[%s3 + $0x8] sm:$0xf]
    %v347 = vld [vmem:[%s3 + $0xc] sm:$0xf]
    %v348 = vld [vmem:[%s3 + $0x10] sm:$0xf]
    %v349 = vld [vmem:[%s3 + $0x14] sm:$0xf]
    %v350 = vld [vmem:[%s3 + $0x18] sm:$0xf]
    %v351 = vld [vmem:[%s3 + $0x1c] sm:$0xf]
    %v352 = vld [vmem:[%s3 + $0x20] sm:$0xf]
    %v353 = vld [vmem:[%s3 + $0x24] sm:$0xf]
    %v354 = vld [vmem:[%s3 + $0x28] sm:$0xf]
    %v355 = vld [vmem:[%s3 + $0x2c] sm:$0xf]
    %v356 = vld [vmem:[%s3 + $0x30] sm:$0xf]
    %v357 = vld [vmem:[%s3 + $0x34] sm:$0xf]
    %v358 = vld [vmem:[%s3 + $0x38] sm:$0xf]
    %v359 = vld [vmem:[%s3 + $0x3c] sm:$0xf]
    %v360 = vld [vmem:[%s2] sm:$0xf]
    %v361 = vld [vmem:[%s2 + $0x4] sm:$0xf]
    %v362 = vld [vmem:[%s2 + $0x8] sm:$0xf]
    %v363 = vld [vmem:[%s2 + $0xc] sm:$0xf]
    %v364 = vld [vmem:[%s2 + $0x10] sm:$0xf]
    %v365 = vld [vmem:[%s2 + $0x14] sm:$0xf]
    %v366 = vld [vmem:[%s2 + $0x18] sm:$0xf]
    %v367 = vld [vmem:[%s2 + $0x1c] sm:$0xf]
    %v368 = vld [vmem:[%s2 + $0x20] sm:$0xf]
    %v369 = vld [vmem:[%s2 + $0x24] sm:$0xf]
    %v370 = vld [vmem:[%s2 + $0x28] sm:$0xf]
    %v371 = vld [vmem:[%s2 + $0x2c] sm:$0xf]
    %v372 = vld [vmem:[%s2 + $0x30] sm:$0xf]
    %v373 = vld [vmem:[%s2 + $0x34] sm:$0xf]
    %v374 = vld [vmem:[%s2 + $0x38] sm:$0xf]
    %v375 = vld [vmem:[%s2 + $0x3c] sm:$0xf]
    %v376 = vld [vmem:[%s4] sm:$0xf]
    %v377 = vld [vmem:[%s4 + $0x4] sm:$0xf]
    %v378 = vld [vmem:[%s4 + $0x8] sm:$0xf]
    %v379 = vld [vmem:[%s4 + $0xc] sm:$0xf]
    %v380 = vld [vmem:[%s4 + $0x10] sm:$0xf]
    %v381 = vld [vmem:[%s4 + $0x14] sm:$0xf]
    %v382 = vld [vmem:[%s4 + $0x18] sm:$0xf]
    %v383 = vld [vmem:[%s4 + $0x1c] sm:$0xf]
    %v384 = vld [vmem:[%s4 + $0x20] sm:$0xf]
    %v385 = vld [vmem:[%s4 + $0x24] sm:$0xf]
    %v386 = vld [vmem:[%s4 + $0x28] sm:$0xf]
    %v387 = vld [vmem:[%s4 + $0x2c] sm:$0xf]
    %v388 = vld [vmem:[%s4 + $0x30] sm:$0xf]
    %v389 = vld [vmem:[%s4 + $0x34] sm:$0xf]
    %v390 = vld [vmem:[%s4 + $0x38] sm:$0xf]
    %v391 = vld [vmem:[%s4 + $0x3c] sm:$0xf]
    %v408 = vunpack.c.l.b16 %v360
    %v409 = vunpack.c.l.b16 %v361
    %v410 = vunpack.c.l.b16 %v362
    %v411 = vunpack.c.l.b16 %v363
    %v412 = vunpack.c.l.b16 %v364
    %v413 = vunpack.c.l.b16 %v365
    %v414 = vunpack.c.l.b16 %v366
    %v415 = vunpack.c.l.b16 %v367
    %v416 = vunpack.c.l.b16 %v368
    %v417 = vunpack.c.l.b16 %v369
    %v418 = vunpack.c.l.b16 %v370
    %v419 = vunpack.c.l.b16 %v371
    %v420 = vunpack.c.l.b16 %v372
    %v421 = vunpack.c.l.b16 %v373
    %v422 = vunpack.c.l.b16 %v374
    %v423 = vunpack.c.l.b16 %v375
    %v424 = vpack.c.b16 %v409, %v408
    %v425 = vpack.c.b16 %v411, %v410
    %v426 = vpack.c.b16 %v413, %v412
    %v427 = vpack.c.b16 %v415, %v414
    %v428 = vpack.c.b16 %v417, %v416
    %v429 = vpack.c.b16 %v419, %v418
    %v430 = vpack.c.b16 %v421, %v420
    %v431 = vpack.c.b16 %v423, %v422
    %v456 = vunpack.c.l.b16 %v376
    %v457 = vunpack.c.l.b16 %v377
    %v458 = vunpack.c.l.b16 %v378
    %v459 = vunpack.c.l.b16 %v379
    %v460 = vunpack.c.l.b16 %v380
    %v461 = vunpack.c.l.b16 %v381
    %v462 = vunpack.c.l.b16 %v382
    %v463 = vunpack.c.l.b16 %v383
    %v464 = vunpack.c.l.b16 %v384
    %v465 = vunpack.c.l.b16 %v385
    %v466 = vunpack.c.l.b16 %v386
    %v467 = vunpack.c.l.b16 %v387
    %v468 = vunpack.c.l.b16 %v388
    %v469 = vunpack.c.l.b16 %v389
    %v470 = vunpack.c.l.b16 %v390
    %v471 = vunpack.c.l.b16 %v391
    %v472 = vpack.c.b16 %v457, %v456
    %v473 = vpack.c.b16 %v459, %v458
    %v474 = vpack.c.b16 %v461, %v460
    %v475 = vpack.c.b16 %v463, %v462
    %v476 = vpack.c.b16 %v465, %v464
    %v477 = vpack.c.b16 %v467, %v466
    %v478 = vpack.c.b16 %v469, %v468
    %v479 = vpack.c.b16 %v471, %v470
    %488 = vmatprep.subr.bf16.mxu0 0
    %489 = vmatpush1.bf16.msra.mxu0 %v479
    %490 = vmatprep.subr.bf16.mxu0 0
    %491 = vmatpush1.bf16.msra.mxu0 %v478
    %492 = vmatprep.subr.bf16.mxu0 0
    %493 = vmatpush1.bf16.msra.mxu0 %v477
    %494 = vmatprep.subr.bf16.mxu0 0
    %495 = vmatpush1.bf16.msra.mxu0 %v476
    %496 = vmatprep.subr.bf16.mxu0 0
    %497 = vmatpush1.bf16.msra.mxu0 %v475
    %498 = vmatprep.subr.bf16.mxu0 0
    %499 = vmatpush1.bf16.msra.mxu0 %v474
    %500 = vmatprep.subr.bf16.mxu0 0
    %501 = vmatpush1.bf16.msra.mxu0 %v473
    %502 = vmatprep.subr.bf16.mxu0 0
    %503 = vmatpush1.bf16.msra.mxu0 %v472
    %504 = vmatprep.subr.bf16.mxu0 0
    %505 = vmatpush2.bf16.msra.mxu0 0
    %506 = vmatprep.subr.bf16.mxu0 0
    %507 = vmatpush2.bf16.msra.mxu0 0
    %508 = vmatprep.subr.bf16.mxu0 0
    %509 = vmatpush2.bf16.msra.mxu0 0
    %510 = vmatprep.subr.bf16.mxu0 0
    %511 = vmatpush2.bf16.msra.mxu0 0
    %512 = vmatprep.subr.bf16.mxu0 0
    %513 = vmatpush2.bf16.msra.mxu0 0
    %514 = vmatprep.subr.bf16.mxu0 0
    %515 = vmatpush2.bf16.msra.mxu0 0
    %516 = vmatprep.subr.bf16.mxu0 0
    %517 = vmatpush2.bf16.msra.mxu0 0
    %518 = vmatprep.subr.bf16.mxu0 0
    %519 = vmatpush2.bf16.msra.mxu0 0
    %520 = vmatprep.mubr.bf16.mxu0 0
    %521 = vmatmul.mubr.bf16.gmra.mxu0 %v424
    %v522 = vpop.f32.mrf.mxu0
    %v523 = vadd.f32 0.0, %v522
    %v524 = vpop.f32.mrf.mxu0
    %v525 = vpop.f32.mrf.mxu0
    %v526 = vadd.f32 0.0, %v525
    %v527 = vpop.f32.mrf.mxu0
    %528 = vmatprep.mubr.bf16.mxu0 0
    %529 = vmatmul.mubr.bf16.gmra.mxu0 %v425
    %v530 = vpop.f32.mrf.mxu0
    %v531 = vadd.f32 0.0, %v530
    %v532 = vpop.f32.mrf.mxu0
    %v533 = vpop.f32.mrf.mxu0
    %v534 = vadd.f32 0.0, %v533
    %v535 = vpop.f32.mrf.mxu0
    %536 = vmatprep.mubr.bf16.mxu0 0
    %537 = vmatmul.mubr.bf16.gmra.mxu0 %v426
    %v538 = vpop.f32.mrf.mxu0
    %v539 = vadd.f32 0.0, %v538
    %v540 = vpop.f32.mrf.mxu0
    %v541 = vpop.f32.mrf.mxu0
    %v542 = vadd.f32 0.0, %v541
    %v543 = vpop.f32.mrf.mxu0
    %544 = vmatprep.mubr.bf16.mxu0 0
    %545 = vmatmul.mubr.bf16.gmra.mxu0 %v427
    %v546 = vpop.f32.mrf.mxu0
    %v547 = vadd.f32 0.0, %v546
    %v548 = vpop.f32.mrf.mxu0
    %v549 = vpop.f32.mrf.mxu0
    %v550 = vadd.f32 0.0, %v549
    %v551 = vpop.f32.mrf.mxu0
    %552 = vmatprep.mubr.bf16.mxu0 0
    %553 = vmatmul.mubr.bf16.gmra.mxu0 %v428
    %v554 = vpop.f32.mrf.mxu0
    %v555 = vadd.f32 0.0, %v554
    %v556 = vpop.f32.mrf.mxu0
    %v557 = vpop.f32.mrf.mxu0
    %v558 = vadd.f32 0.0, %v557
    %v559 = vpop.f32.mrf.mxu0
    %560 = vmatprep.mubr.bf16.mxu0 0
    %561 = vmatmul.mubr.bf16.gmra.mxu0 %v429
    %v562 = vpop.f32.mrf.mxu0
    %v563 = vadd.f32 0.0, %v562
    %v564 = vpop.f32.mrf.mxu0
    %v565 = vpop.f32.mrf.mxu0
    %v566 = vadd.f32 0.0, %v565
    %v567 = vpop.f32.mrf.mxu0
    %568 = vmatprep.mubr.bf16.mxu0 0
    %569 = vmatmul.mubr.bf16.gmra.mxu0 %v430
    %v570 = vpop.f32.mrf.mxu0
    %v571 = vadd.f32 0.0, %v570
    %v572 = vpop.f32.mrf.mxu0
    %v573 = vpop.f32.mrf.mxu0
    %v574 = vadd.f32 0.0, %v573
    %v575 = vpop.f32.mrf.mxu0
    %576 = vmatprep.mubr.bf16.mxu0 0
    %577 = vmatmul.mubr.bf16.gmra.mxu0 %v431
    %v578 = vpop.f32.mrf.mxu0
    %v579 = vadd.f32 0.0, %v578
    %v580 = vpop.f32.mrf.mxu0
    %v581 = vpop.f32.mrf.mxu0
    %v582 = vadd.f32 0.0, %v581
    %v583 = vpop.f32.mrf.mxu0
    %584 = vdwg.mxu0
    %v601 = vunpack.c.l.b16 %v344
    %v602 = vunpack.c.l.b16 %v345
    %v603 = vunpack.c.l.b16 %v346
    %v604 = vunpack.c.l.b16 %v347
    %v605 = vunpack.c.l.b16 %v348
    %v606 = vunpack.c.l.b16 %v349
    %v607 = vunpack.c.l.b16 %v350
    %v608 = vunpack.c.l.b16 %v351
    %v609 = vunpack.c.l.b16 %v352
    %v610 = vunpack.c.l.b16 %v353
    %v611 = vunpack.c.l.b16 %v354
    %v612 = vunpack.c.l.b16 %v355
    %v613 = vunpack.c.l.b16 %v356
    %v614 = vunpack.c.l.b16 %v357
    %v615 = vunpack.c.l.b16 %v358
    %v616 = vunpack.c.l.b16 %v359
    %v617 = vpack.c.b16 %v602, %v601
    %v618 = vpack.c.b16 %v604, %v603
    %v619 = vpack.c.b16 %v606, %v605
    %v620 = vpack.c.b16 %v608, %v607
    %v621 = vpack.c.b16 %v610, %v609
    %v622 = vpack.c.b16 %v612, %v611
    %v623 = vpack.c.b16 %v614, %v613
    %v624 = vpack.c.b16 %v616, %v615
    %633 = vmatprep.subr.bf16.mxu0 0
    %634 = vmatpush1.bf16.msra.mxu0 %v624
    %635 = vmatprep.subr.bf16.mxu0 0
    %636 = vmatpush1.bf16.msra.mxu0 %v623
    %637 = vmatprep.subr.bf16.mxu0 0
    %638 = vmatpush1.bf16.msra.mxu0 %v622
    %639 = vmatprep.subr.bf16.mxu0 0
    %640 = vmatpush1.bf16.msra.mxu0 %v621
    %641 = vmatprep.subr.bf16.mxu0 0
    %642 = vmatpush1.bf16.msra.mxu0 %v620
    %643 = vmatprep.subr.bf16.mxu0 0
    %644 = vmatpush1.bf16.msra.mxu0 %v619
    %645 = vmatprep.subr.bf16.mxu0 0
    %646 = vmatpush1.bf16.msra.mxu0 %v618
    %647 = vmatprep.subr.bf16.mxu0 0
    %648 = vmatpush1.bf16.msra.mxu0 %v617
    %649 = vmatprep.subr.bf16.mxu0 0
    %650 = vmatpush2.bf16.msra.mxu0 0
    %651 = vmatprep.subr.bf16.mxu0 0
    %652 = vmatpush2.bf16.msra.mxu0 0
    %653 = vmatprep.subr.bf16.mxu0 0
    %654 = vmatpush2.bf16.msra.mxu0 0
    %655 = vmatprep.subr.bf16.mxu0 0
    %656 = vmatpush2.bf16.msra.mxu0 0
    %657 = vmatprep.subr.bf16.mxu0 0
    %658 = vmatpush2.bf16.msra.mxu0 0
    %659 = vmatprep.subr.bf16.mxu0 0
    %660 = vmatpush2.bf16.msra.mxu0 0
    %661 = vmatprep.subr.bf16.mxu0 0
    %662 = vmatpush2.bf16.msra.mxu0 0
    %663 = vmatprep.subr.bf16.mxu0 0
    %664 = vmatpush2.bf16.msra.mxu0 0
    %665 = vmatprep.mubr.bf16.mxu0 0
    %666 = vmatmul.mubr.bf16.gmra.mxu0 %v336
    %v667 = vpop.f32.mrf.mxu0
    %v668 = vadd.f32 %v523, %v667
    %v669 = vpop.f32.mrf.mxu0
    %v670 = vpop.f32.mrf.mxu0
    %v671 = vadd.f32 %v526, %v670
    %v672 = vpop.f32.mrf.mxu0
    %673 = vmatprep.mubr.bf16.mxu0 0
    %674 = vmatmul.mubr.bf16.gmra.mxu0 %v337
    %v675 = vpop.f32.mrf.mxu0
    %v676 = vadd.f32 %v531, %v675
    %v677 = vpop.f32.mrf.mxu0
    %v678 = vpop.f32.mrf.mxu0
    %v679 = vadd.f32 %v534, %v678
    %v680 = vpop.f32.mrf.mxu0
    %681 = vmatprep.mubr.bf16.mxu0 0
    %682 = vmatmul.mubr.bf16.gmra.mxu0 %v338
    %v683 = vpop.f32.mrf.mxu0
    %v684 = vadd.f32 %v539, %v683
    %v685 = vpop.f32.mrf.mxu0
    %v686 = vpop.f32.mrf.mxu0
    %v687 = vadd.f32 %v542, %v686
    %v688 = vpop.f32.mrf.mxu0
    %689 = vmatprep.mubr.bf16.mxu0 0
    %690 = vmatmul.mubr.bf16.gmra.mxu0 %v339
    %v691 = vpop.f32.mrf.mxu0
    %v692 = vadd.f32 %v547, %v691
    %v693 = vpop.f32.mrf.mxu0
    %v694 = vpop.f32.mrf.mxu0
    %v695 = vadd.f32 %v550, %v694
    %v696 = vpop.f32.mrf.mxu0
    %697 = vmatprep.mubr.bf16.mxu0 0
    %698 = vmatmul.mubr.bf16.gmra.mxu0 %v340
    %v699 = vpop.f32.mrf.mxu0
    %v700 = vadd.f32 %v555, %v699
    %v701 = vpop.f32.mrf.mxu0
    %v702 = vpop.f32.mrf.mxu0
    %v703 = vadd.f32 %v558, %v702
    %v704 = vpop.f32.mrf.mxu0
    %705 = vmatprep.mubr.bf16.mxu0 0
    %706 = vmatmul.mubr.bf16.gmra.mxu0 %v341
    %v707 = vpop.f32.mrf.mxu0
    %v708 = vadd.f32 %v563, %v707
    %v709 = vpop.f32.mrf.mxu0
    %v710 = vpop.f32.mrf.mxu0
    %v711 = vadd.f32 %v566, %v710
    %v712 = vpop.f32.mrf.mxu0
    %713 = vmatprep.mubr.bf16.mxu0 0
    %714 = vmatmul.mubr.bf16.gmra.mxu0 %v342
    %v715 = vpop.f32.mrf.mxu0
    %v716 = vadd.f32 %v571, %v715
    %v717 = vpop.f32.mrf.mxu0
    %v718 = vpop.f32.mrf.mxu0
    %v719 = vadd.f32 %v574, %v718
    %v720 = vpop.f32.mrf.mxu0
    %721 = vmatprep.mubr.bf16.mxu0 0
    %722 = vmatmul.mubr.bf16.gmra.mxu0 %v343
    %v723 = vpop.f32.mrf.mxu0
    %v724 = vadd.f32 %v579, %v723
    %v725 = vpop.f32.mrf.mxu0
    %v726 = vpop.f32.mrf.mxu0
    %v727 = vadd.f32 %v582, %v726
    %v728 = vpop.f32.mrf.mxu0
    %729 = vdwg.mxu0
    %v730 = vld [vmem:[%s5] sm:$0x1]
    %v732 = vlaneseq
    %v733 = vshrl.u32 %v732, 7
    %v734 = vsub.s32 0, %v733
    %v735 = vrot.slane %v730, %v734
    %v737 = vadd.f32 %v668, %v735
    %v738 = vadd.f32 %v671, %v735
    %v739 = vadd.f32 %v676, %v735
    %v740 = vadd.f32 %v679, %v735
    %v741 = vadd.f32 %v684, %v735
    %v742 = vadd.f32 %v687, %v735
    %v743 = vadd.f32 %v692, %v735
    %v744 = vadd.f32 %v695, %v735
    %v745 = vadd.f32 %v700, %v735
    %v746 = vadd.f32 %v703, %v735
    %v747 = vadd.f32 %v708, %v735
    %v748 = vadd.f32 %v711, %v735
    %v749 = vadd.f32 %v716, %v735
    %v750 = vadd.f32 %v719, %v735
    %v751 = vadd.f32 %v724, %v735
    %v752 = vadd.f32 %v727, %v735
    %v753 = vlaneseq
    %v754 = vand.u32 %v753, 127
    %vm755 = vcmp.lt.s32.totalorder %v754, 8
    %v756 = vsel %vm755, %v737, -1e+30
    %v757 = vsel %vm755, %v738, -1e+30
    %v758 = vsel %vm755, %v739, -1e+30
    %v759 = vsel %vm755, %v740, -1e+30
    %v760 = vsel %vm755, %v741, -1e+30
    %v761 = vsel %vm755, %v742, -1e+30
    %v762 = vsel %vm755, %v743, -1e+30
    %v763 = vsel %vm755, %v744, -1e+30
    %v764 = vsel %vm755, %v745, -1e+30
    %v765 = vsel %vm755, %v746, -1e+30
    %v766 = vsel %vm755, %v747, -1e+30
    %v767 = vsel %vm755, %v748, -1e+30
    %v768 = vsel %vm755, %v749, -1e+30
    %v769 = vsel %vm755, %v750, -1e+30
    %v770 = vsel %vm755, %v751, -1e+30
    %v771 = vsel %vm755, %v752, -1e+30
    %772 = vmax.xlane.f32.xlu0 %v756
    %v773 = vpop.xlane.xlu0 %772
    %774 = vmax.xlane.f32.xlu0 %v757
    %v775 = vpop.xlane.xlu0 %774
    %776 = vmax.xlane.f32.xlu0 %v758
    %v777 = vpop.xlane.xlu0 %776
    %778 = vmax.xlane.f32.xlu0 %v759
    %v779 = vpop.xlane.xlu0 %778
    %780 = vmax.xlane.f32.xlu0 %v760
    %v781 = vpop.xlane.xlu0 %780
    %782 = vmax.xlane.f32.xlu0 %v761
    %v783 = vpop.xlane.xlu0 %782
    %784 = vmax.xlane.f32.xlu0 %v762
    %v785 = vpop.xlane.xlu0 %784
    %786 = vmax.xlane.f32.xlu0 %v763
    %v787 = vpop.xlane.xlu0 %786
    %788 = vmax.xlane.f32.xlu0 %v764
    %v789 = vpop.xlane.xlu0 %788
    %790 = vmax.xlane.f32.xlu0 %v765
    %v791 = vpop.xlane.xlu0 %790
    %792 = vmax.xlane.f32.xlu0 %v766
    %v793 = vpop.xlane.xlu0 %792
    %794 = vmax.xlane.f32.xlu0 %v767
    %v795 = vpop.xlane.xlu0 %794
    %796 = vmax.xlane.f32.xlu0 %v768
    %v797 = vpop.xlane.xlu0 %796
    %798 = vmax.xlane.f32.xlu0 %v769
    %v799 = vpop.xlane.xlu0 %798
    %800 = vmax.xlane.f32.xlu0 %v770
    %v801 = vpop.xlane.xlu0 %800
    %802 = vmax.xlane.f32.xlu0 %v771
    %v803 = vpop.xlane.xlu0 %802
    %v804 = vsub.f32 %v756, %v773
    %v805 = vsub.f32 %v757, %v775
    %v806 = vsub.f32 %v758, %v777
    %v807 = vsub.f32 %v759, %v779
    %v808 = vsub.f32 %v760, %v781
    %v809 = vsub.f32 %v761, %v783
    %v810 = vsub.f32 %v762, %v785
    %v811 = vsub.f32 %v763, %v787
    %v812 = vsub.f32 %v764, %v789
    %v813 = vsub.f32 %v765, %v791
    %v814 = vsub.f32 %v766, %v793
    %v815 = vsub.f32 %v767, %v795
    %v816 = vsub.f32 %v768, %v797
    %v817 = vsub.f32 %v769, %v799
    %v818 = vsub.f32 %v770, %v801
    %v819 = vsub.f32 %v771, %v803
    %v820 = vmul.f32 %v804, 1.442695
    %v821 = vpow.pop %v820
    %v822 = vmul.f32 %v805, 1.442695
    %v823 = vpow.pop %v822
    %v824 = vmul.f32 %v806, 1.442695
    %v825 = vpow.pop %v824
    %v826 = vmul.f32 %v807, 1.442695
    %v827 = vpow.pop %v826
    %v828 = vmul.f32 %v808, 1.442695
    %v829 = vpow.pop %v828
    %v830 = vmul.f32 %v809, 1.442695
    %v831 = vpow.pop %v830
    %v832 = vmul.f32 %v810, 1.442695
    %v833 = vpow.pop %v832
    %v834 = vmul.f32 %v811, 1.442695
    %v835 = vpow.pop %v834
    %v836 = vmul.f32 %v812, 1.442695
    %v837 = vpow.pop %v836
    %v838 = vmul.f32 %v813, 1.442695
    %v839 = vpow.pop %v838
    %v840 = vmul.f32 %v814, 1.442695
    %v841 = vpow.pop %v840
    %v842 = vmul.f32 %v815, 1.442695
    %v843 = vpow.pop %v842
    %v844 = vmul.f32 %v816, 1.442695
    %v845 = vpow.pop %v844
    %v846 = vmul.f32 %v817, 1.442695
    %v847 = vpow.pop %v846
    %v848 = vmul.f32 %v818, 1.442695
    %v849 = vpow.pop %v848
    %v850 = vmul.f32 %v819, 1.442695
    %v851 = vpow.pop %v850
    %852 = vadd.xlane.f32.xlu0 %v821
    %v853 = vpop.xlane.xlu0 %852
    %854 = vadd.xlane.f32.xlu0 %v823
    %v855 = vpop.xlane.xlu0 %854
    %856 = vadd.xlane.f32.xlu0 %v825
    %v857 = vpop.xlane.xlu0 %856
    %858 = vadd.xlane.f32.xlu0 %v827
    %v859 = vpop.xlane.xlu0 %858
    %860 = vadd.xlane.f32.xlu0 %v829
    %v861 = vpop.xlane.xlu0 %860
    %862 = vadd.xlane.f32.xlu0 %v831
    %v863 = vpop.xlane.xlu0 %862
    %864 = vadd.xlane.f32.xlu0 %v833
    %v865 = vpop.xlane.xlu0 %864
    %866 = vadd.xlane.f32.xlu0 %v835
    %v867 = vpop.xlane.xlu0 %866
    %868 = vadd.xlane.f32.xlu0 %v837
    %v869 = vpop.xlane.xlu0 %868
    %870 = vadd.xlane.f32.xlu0 %v839
    %v871 = vpop.xlane.xlu0 %870
    %872 = vadd.xlane.f32.xlu0 %v841
    %v873 = vpop.xlane.xlu0 %872
    %874 = vadd.xlane.f32.xlu0 %v843
    %v875 = vpop.xlane.xlu0 %874
    %876 = vadd.xlane.f32.xlu0 %v845
    %v877 = vpop.xlane.xlu0 %876
    %878 = vadd.xlane.f32.xlu0 %v847
    %v879 = vpop.xlane.xlu0 %878
    %880 = vadd.xlane.f32.xlu0 %v849
    %v881 = vpop.xlane.xlu0 %880
    %882 = vadd.xlane.f32.xlu0 %v851
    %v883 = vpop.xlane.xlu0 %882
    %v884 = vlog2.pop %v853
    %v885 = vmul.f32 %v884, 0.6931472
    %v886 = vlog2.pop %v855
    %v887 = vmul.f32 %v886, 0.6931472
    %v888 = vlog2.pop %v857
    %v889 = vmul.f32 %v888, 0.6931472
    %v890 = vlog2.pop %v859
    %v891 = vmul.f32 %v890, 0.6931472
    %v892 = vlog2.pop %v861
    %v893 = vmul.f32 %v892, 0.6931472
    %v894 = vlog2.pop %v863
    %v895 = vmul.f32 %v894, 0.6931472
    %v896 = vlog2.pop %v865
    %v897 = vmul.f32 %v896, 0.6931472
    %v898 = vlog2.pop %v867
    %v899 = vmul.f32 %v898, 0.6931472
    %v900 = vlog2.pop %v869
    %v901 = vmul.f32 %v900, 0.6931472
    %v902 = vlog2.pop %v871
    %v903 = vmul.f32 %v902, 0.6931472
    %v904 = vlog2.pop %v873
    %v905 = vmul.f32 %v904, 0.6931472
    %v906 = vlog2.pop %v875
    %v907 = vmul.f32 %v906, 0.6931472
    %v908 = vlog2.pop %v877
    %v909 = vmul.f32 %v908, 0.6931472
    %v910 = vlog2.pop %v879
    %v911 = vmul.f32 %v910, 0.6931472
    %v912 = vlog2.pop %v881
    %v913 = vmul.f32 %v912, 0.6931472
    %v914 = vlog2.pop %v883
    %v915 = vmul.f32 %v914, 0.6931472
    %v916 = vsub.f32 %v804, %v885
    %v917 = vsub.f32 %v805, %v887
    %v918 = vsub.f32 %v806, %v889
    %v919 = vsub.f32 %v807, %v891
    %v920 = vsub.f32 %v808, %v893
    %v921 = vsub.f32 %v809, %v895
    %v922 = vsub.f32 %v810, %v897
    %v923 = vsub.f32 %v811, %v899
    %v924 = vsub.f32 %v812, %v901
    %v925 = vsub.f32 %v813, %v903
    %v926 = vsub.f32 %v814, %v905
    %v927 = vsub.f32 %v815, %v907
    %v928 = vsub.f32 %v816, %v909
    %v929 = vsub.f32 %v817, %v911
    %v930 = vsub.f32 %v818, %v913
    %v931 = vsub.f32 %v819, %v915
    %932 = vst [vmem:[%s6] sm:$0xff] %v916
    %933 = vst [vmem:[%s6 + $0x8] sm:$0xff] %v917
    %934 = vst [vmem:[%s6 + $0x10] sm:$0xff] %v918
    %935 = vst [vmem:[%s6 + $0x18] sm:$0xff] %v919
    %936 = vst [vmem:[%s6 + $0x20] sm:$0xff] %v920
    %937 = vst [vmem:[%s6 + $0x28] sm:$0xff] %v921
    %938 = vst [vmem:[%s6 + $0x30] sm:$0xff] %v922
    %939 = vst [vmem:[%s6 + $0x38] sm:$0xff] %v923
    %940 = vst [vmem:[%s6 + $0x40] sm:$0xff] %v924
    %941 = vst [vmem:[%s6 + $0x48] sm:$0xff] %v925
    %942 = vst [vmem:[%s6 + $0x50] sm:$0xff] %v926
    %943 = vst [vmem:[%s6 + $0x58] sm:$0xff] %v927
    %944 = vst [vmem:[%s6 + $0x60] sm:$0xff] %v928
    %945 = vst [vmem:[%s6 + $0x68] sm:$0xff] %v929
    %946 = vst [vmem:[%s6 + $0x70] sm:$0xff] %v930
    %947 = vst [vmem:[%s6 + $0x78] sm:$0xff] %v931
  $region33: #{cluster_gcn_forward.5} parent=0 // pred_fallthru
    _
  // Predicated region
  $region34: #{cluster_gcn_forward.5} parent=0 // pred_check
    _
  $region35: #{cluster_gcn_forward.5} parent=0 // pred_check_branch
    %949 = sbr.rel (0) target = $region37
  $region36: #{cluster_gcn_forward.5} parent=0 // pred_region
    _
  $region37: #{cluster_gcn_forward.5} parent=0 // pred_fallthru
    _
  // Predicated region
  $region38: #{cluster_gcn_forward.5} parent=0 // pred_check
    _
  $region39: #{cluster_gcn_forward.5} parent=0 // pred_check_branch
    %951 = sbr.rel (0) target = $region41
  $region40: #{cluster_gcn_forward.5} parent=0 // pred_region
    _
  $region41: #{cluster_gcn_forward.5} parent=0 // pred_fallthru
    _

</llo_original>
